<compile_context>
chip_gen: v7x
topology: tpu7x:2x2x1
jax: 0.10.0
libtpu: 0.0.40
codegen_flags: <defaults>
</compile_context>

<pallas_src>
import functools

import jax
import jax.numpy as jnp
from jax.experimental import pallas as pl
from jax.experimental.pallas import tpu as pltpu


def _fused_conv_bn_relu_kernel(*refs, num_blocks, k, H, W, off):
    """One batch element: num_blocks x (conv + folded-BN bias -> ReLU) in VMEM.

    refs = (x, w_0, b_0, ..., w_{B-1}, b_{B-1}, out, pad_0, ..., pad_{B-1})
      x     : (C_in, H*W)            activation, spatially flattened (w fastest)
      w_i   : (k, k, Cout_i, Cin_i)  folded conv weights, pre-transposed
      b_i   : (Cout_i, 1)            folded bias (column vector)
      out   : (Cout_last, H*W)
      pad_i : VMEM scratch (Cin_i, H*W + 2*off) = zero-padded flat activation
    """
    HW = H * W
    p = (k - 1) // 2

    x_ref = refs[0]
    wb_refs = refs[1:1 + 2 * num_blocks]
    o_ref = refs[1 + 2 * num_blocks]
    pad_refs = refs[2 + 2 * num_blocks:]

    # Per-dx column masks, shared by every block (hoisted out of all loops):
    # output column w is valid for horizontal tap offset d iff 0 <= w + d < W.
    col = jax.lax.broadcasted_iota(jnp.int32, (1, HW), 1) % W
    col_masks = {}
    for dx in range(k):
        d = dx - p
        if d != 0:
            col_masks[dx] = jnp.logical_and(col + d >= 0, col + d < W)

    cur = x_ref[...]                                     # (C, HW) f32
    for blk in range(num_blocks):
        w_ref = wb_refs[2 * blk]
        b_ref = wb_refs[2 * blk + 1]
        pad = pad_refs[blk]
        cout = w_ref.shape[2]

        # Zero-padded, flattened activation: real data lives at [off, off+HW).
        pad[...] = jnp.zeros_like(pad)
        pad[:, off:off + HW] = cur                       # lane-aligned store

        acc = jnp.zeros((cout, HW), jnp.float32)
        for dy in range(k):
            for dx in range(k):
                s = (dy - p) * W + (dx - p)
                # Contiguous lane-offset slice: no reshape / relayout per tap.
                patch = pad[:, off + s:off + s + HW]     # (Cin, HW)
                if dx in col_masks:
                    patch = jnp.where(col_masks[dx], patch, 0.0)
                acc = acc + jnp.dot(w_ref[dy, dx], patch,
                                    preferred_element_type=jnp.float32)
        cur = jnp.maximum(acc + b_ref[...], 0.0)         # bias + ReLU

    o_ref[...] = cur.astype(o_ref.dtype)


def conv2d_block_forward(x_nchw, params):
    """PyTorch-equivalent forward: NCHW in, NCHW out, one fused pallas_call."""
    N, C0, H, W = x_nchw.shape
    num_blocks = len(params)
    k = params[0][0].shape[0]
    p = (k - 1) // 2
    HW = H * W
    off = pl.cdiv(p * W + p, 128) * 128      # lane-aligned interior offset

    x = x_nchw.reshape(N, C0, HW).astype(jnp.float32)    # free layout-wise

    flat_inputs = [x]
    in_specs = [pl.BlockSpec((pl.Squeezed(), C0, HW), lambda n: (n, 0, 0))]
    scratch_shapes = []
    cin = C0
    for w_hwio, b_fused in params:
        kh, kw, wcin, cout = w_hwio.shape
        assert (kh, kw, wcin) == (k, k, cin)
        # HWIO -> (kh, kw, Cout, Cin) so each tap is a lane-dense
        # (Cout, Cin) @ (Cin, H*W) matmul on the MXU.
        w_t = jnp.transpose(w_hwio, (0, 1, 3, 2)).astype(jnp.float32)
        b_col = b_fused.reshape(cout, 1).astype(jnp.float32)
        flat_inputs += [w_t, b_col]
        in_specs += [
            pl.BlockSpec((k, k, cout, cin), lambda n: (0, 0, 0, 0)),
            pl.BlockSpec((cout, 1), lambda n: (0, 0)),
        ]
        scratch_shapes.append(pltpu.VMEM((cin, HW + 2 * off), jnp.float32))
        cin = cout
    cout_last = cin

    kernel = functools.partial(
        _fused_conv_bn_relu_kernel,
        num_blocks=num_blocks, k=k, H=H, W=W, off=off)

    out = pl.pallas_call(
        kernel,
        out_shape=jax.ShapeDtypeStruct((N, cout_last, HW), jnp.float32),
        grid=(N,),
        in_specs=in_specs,
        out_specs=pl.BlockSpec((pl.Squeezed(), cout_last, HW),
                               lambda n: (n, 0, 0)),
        scratch_shapes=scratch_shapes,
        compiler_params=pltpu.CompilerParams(
            dimension_semantics=("parallel",)),
    )(*flat_inputs)

    return out.reshape(N, cout_last, H, W)               # already NCHW


def init_params(key, in_channels, out_channels, kernel_size, num_blocks=2):
    """Deterministic synthetic params; BN folded into conv weight/bias (HWIO)."""
    in_chs = [in_channels] + [out_channels] * (num_blocks - 1)
    eps = 1e-5
    params = []
    for i in range(num_blocks):
        key, k1, k2, k3, k4, k5, k6 = jax.random.split(key, 7)
        cin = in_chs[i]
        w = 0.1 * jax.random.normal(
            k1, (kernel_size, kernel_size, cin, out_channels), jnp.float32)
        b = 0.1 * jax.random.normal(k2, (out_channels,), jnp.float32)
        gamma = 1.0 + 0.1 * jax.random.normal(k3, (out_channels,), jnp.float32)
        beta = 0.1 * jax.random.normal(k4, (out_channels,), jnp.float32)
        rmean = 0.1 * jax.random.normal(k5, (out_channels,), jnp.float32)
        rvar = 1.0 + 0.1 * jax.random.uniform(k6, (out_channels,), jnp.float32)
        s = gamma / jnp.sqrt(rvar + eps)          # (Cout,)
        w_fused = w * s                           # scale per output channel
        b_fused = b * s + (beta - rmean * s)
        params.append((w_fused, b_fused))
    return params


def reference_forward(x_nchw, params):
    """Pure-JAX reference (lax.conv) for correctness check."""
    x = jnp.transpose(x_nchw, (0, 2, 3, 1))
    for w_f, b_f in params:
        y = jax.lax.conv_general_dilated(
            x, w_f, window_strides=(1, 1), padding="SAME",
            dimension_numbers=("NHWC", "HWIO", "NHWC"))
        x = jnp.maximum(y + b_f, 0.0)
    return jnp.transpose(x, (0, 3, 1, 2))


if __name__ == "__main__":
    key = jax.random.PRNGKey(0)
    kx, kp = jax.random.split(key)

    # Matches Conv2dBlock(in_channels=4, out_channels=8, kernel_size=3, num_blocks=2)
    batch, in_channels, out_channels, kernel_size, spatial = 2, 4, 8, 3, 16
    x = jax.random.normal(kx, (batch, in_channels, spatial, spatial), jnp.float32)

    params = init_params(kp, in_channels, out_channels, kernel_size, num_blocks=2)

    out = conv2d_block_forward(x, params)
    out = jax.block_until_ready(out)

    assert out.shape == (batch, out_channels, spatial, spatial), out.shape

    ref = reference_forward(x, params)
    max_err = float(jnp.max(jnp.abs(out - ref)))
    assert max_err < 1e-4, f"mismatch vs reference: {max_err}"

    print("KERNEL_OK")
</pallas_src>

<mosaic_0001>
module attributes {stable_mosaic.version = 11 : i64} {
  func.func @_fused_conv_bn_relu_kernel(%arg0: i32, %arg1: memref<1x4x256xf32, #tpu.memory_space<vmem>>, %arg2: memref<3x3x8x4xf32, #tpu.memory_space<vmem>>, %arg3: memref<8x1xf32, #tpu.memory_space<vmem>>, %arg4: memref<3x3x8x8xf32, #tpu.memory_space<vmem>>, %arg5: memref<8x1xf32, #tpu.memory_space<vmem>>, %arg6: memref<1x8x256xf32, #tpu.memory_space<vmem>>, %arg7: memref<4x512xf32, #tpu.memory_space<vmem>>, %arg8: memref<8x512xf32, #tpu.memory_space<vmem>>) attributes {dimension_semantics = [#tpu.dimension_semantics<parallel>], iteration_bounds = array<i64: 2>, scalar_prefetch = 0 : i64, scratch_operands = 2 : i64, tpu.core_type = #tpu.core_type<tc>, window_params = [{transform_indices = @transform_0, window_bounds = array<i64: 1, 4, 256>}, {pipeline_mode = #tpu.pipeline_mode<synchronous>, transform_indices = @transform_1, window_bounds = array<i64: 3, 3, 8, 4>}, {pipeline_mode = #tpu.pipeline_mode<synchronous>, transform_indices = @transform_2, window_bounds = array<i64: 8, 1>}, {pipeline_mode = #tpu.pipeline_mode<synchronous>, transform_indices = @transform_3, window_bounds = array<i64: 3, 3, 8, 8>}, {pipeline_mode = #tpu.pipeline_mode<synchronous>, transform_indices = @transform_4, window_bounds = array<i64: 8, 1>}, {transform_indices = @transform_5, window_bounds = array<i64: 1, 8, 256>}]} {
    %0 = tpu.iota {dimensions = array<i32: 1>} : vector<1x256xi32>
    %c16_i32 = arith.constant 16 : i32
    %c0_i32 = arith.constant 0 : i32
    %1 = arith.cmpi eq, %c16_i32, %c0_i32 : i32
    %c1_i32 = arith.constant 1 : i32
    %2 = arith.select %1, %c1_i32, %c16_i32 : i32
    %3 = vector.broadcast %2 : i32 to vector<1x256xi32>
    %4 = arith.remsi %0, %3 : vector<1x256xi32>
    %c0_i32_0 = arith.constant 0 : i32
    %5 = vector.broadcast %c0_i32_0 : i32 to vector<1x256xi32>
    %6 = arith.cmpi ne, %4, %5 : vector<1x256xi32>
    %c0_i32_1 = arith.constant 0 : i32
    %7 = vector.broadcast %c0_i32_1 : i32 to vector<1x256xi32>
    %8 = arith.cmpi slt, %4, %7 : vector<1x256xi32>
    %c0_i32_2 = arith.constant 0 : i32
    %9 = arith.cmpi slt, %2, %c0_i32_2 : i32
    %10 = vector.broadcast %9 : i1 to vector<1x256xi1>
    %11 = vector.broadcast %10 : vector<1x256xi1> to vector<1x256xi1>
    %12 = arith.xori %8, %11 : vector<1x256xi1>
    %13 = arith.andi %12, %6 : vector<1x256xi1>
    %14 = vector.broadcast %2 : i32 to vector<1x256xi32>
    %15 = arith.addi %4, %14 : vector<1x256xi32>
    %16 = arith.select %13, %15, %4 : vector<1x256xi1>, vector<1x256xi32>
    %c-1_i32 = arith.constant -1 : i32
    %17 = vector.broadcast %c-1_i32 : i32 to vector<1x256xi32>
    %18 = arith.addi %16, %17 : vector<1x256xi32>
    %c0_i32_3 = arith.constant 0 : i32
    %19 = vector.broadcast %c0_i32_3 : i32 to vector<1x256xi32>
    %20 = arith.cmpi sge, %18, %19 : vector<1x256xi32>
    %c-1_i32_4 = arith.constant -1 : i32
    %21 = vector.broadcast %c-1_i32_4 : i32 to vector<1x256xi32>
    %22 = arith.addi %16, %21 : vector<1x256xi32>
    %c16_i32_5 = arith.constant 16 : i32
    %23 = vector.broadcast %c16_i32_5 : i32 to vector<1x256xi32>
    %24 = arith.cmpi slt, %22, %23 : vector<1x256xi32>
    %25 = arith.andi %20, %24 : vector<1x256xi1>
    %c1_i32_6 = arith.constant 1 : i32
    %26 = vector.broadcast %c1_i32_6 : i32 to vector<1x256xi32>
    %27 = arith.addi %16, %26 : vector<1x256xi32>
    %c0_i32_7 = arith.constant 0 : i32
    %28 = vector.broadcast %c0_i32_7 : i32 to vector<1x256xi32>
    %29 = arith.cmpi sge, %27, %28 : vector<1x256xi32>
    %c1_i32_8 = arith.constant 1 : i32
    %30 = vector.broadcast %c1_i32_8 : i32 to vector<1x256xi32>
    %31 = arith.addi %16, %30 : vector<1x256xi32>
    %c16_i32_9 = arith.constant 16 : i32
    %32 = vector.broadcast %c16_i32_9 : i32 to vector<1x256xi32>
    %33 = arith.cmpi slt, %31, %32 : vector<1x256xi32>
    %34 = arith.andi %29, %33 : vector<1x256xi1>
    %c0 = arith.constant 0 : index
    %c0_10 = arith.constant 0 : index
    %c0_11 = arith.constant 0 : index
    %35 = vector.load %arg1[%c0, %c0_10, %c0_11] : memref<1x4x256xf32, #tpu.memory_space<vmem>>, vector<1x4x256xf32>
    %36 = vector.shape_cast %35 : vector<1x4x256xf32> to vector<4x256xf32>
    %cst = arith.constant 0.000000e+00 : f32
    %37 = vector.broadcast %cst : f32 to vector<4x512xf32>
    %c0_12 = arith.constant 0 : index
    %c0_13 = arith.constant 0 : index
    %38 = vector.load %arg7[%c0_12, %c0_13] : memref<4x512xf32, #tpu.memory_space<vmem>>, vector<4x512xf32>
    tpu.vector_store %arg7[%c0_12, %c0_13], %37 {strides = array<i32>} : memref<4x512xf32, #tpu.memory_space<vmem>>, vector<4x512xf32>,
    %c0_14 = arith.constant 0 : index
    %c128 = arith.constant 128 : index
    %39 = vector.load %arg7[%c0_14, %c128] : memref<4x512xf32, #tpu.memory_space<vmem>>, vector<4x256xf32>
    tpu.vector_store %arg7[%c0_14, %c128], %36 {strides = array<i32>} : memref<4x512xf32, #tpu.memory_space<vmem>>, vector<4x256xf32>,
    %cst_15 = arith.constant 0.000000e+00 : f32
    %40 = vector.broadcast %cst_15 : f32 to vector<8x256xf32>
    %c0_16 = arith.constant 0 : index
    %c111 = arith.constant 111 : index
    %41 = vector.load %arg7[%c0_16, %c111] : memref<4x512xf32, #tpu.memory_space<vmem>>, vector<4x256xf32>
    %cst_17 = arith.constant 0.000000e+00 : f32
    %42 = vector.shape_cast %25 : vector<1x256xi1> to vector<1x256xi1>
    %43 = vector.broadcast %42 : vector<1x256xi1> to vector<4x256xi1>
    %44 = vector.broadcast %cst_17 : f32 to vector<4x256xf32>
    %45 = arith.select %43, %41, %44 : vector<4x256xi1>, vector<4x256xf32>
    %c0_18 = arith.constant 0 : index
    %c0_19 = arith.constant 0 : index
    %c0_20 = arith.constant 0 : index
    %c0_21 = arith.constant 0 : index
    %46 = vector.load %arg2[%c0_18, %c0_19, %c0_20, %c0_21] : memref<3x3x8x4xf32, #tpu.memory_space<vmem>>, vector<1x1x8x4xf32>
    %47 = vector.shape_cast %46 : vector<1x1x8x4xf32> to vector<8x4xf32>
    %cst_22 = arith.constant dense<0.000000e+00> : vector<8x256xf32>
    %48 = tpu.matmul %47, %45, %cst_22 {dimension_numbers = #tpu.dot_dimension_numbers<[1], [0], [0], [1], [0, 0, 1, 1], [], []>} : vector<8x4xf32>, vector<4x256xf32>, vector<8x256xf32> -> vector<8x256xf32>
    %49 = arith.addf %40, %48 : vector<8x256xf32>
    %c0_23 = arith.constant 0 : index
    %c112 = arith.constant 112 : index
    %50 = vector.load %arg7[%c0_23, %c112] : memref<4x512xf32, #tpu.memory_space<vmem>>, vector<4x256xf32>
    %c0_24 = arith.constant 0 : index
    %c1 = arith.constant 1 : index
    %c0_25 = arith.constant 0 : index
    %c0_26 = arith.constant 0 : index
    %51 = vector.load %arg2[%c0_24, %c1, %c0_25, %c0_26] : memref<3x3x8x4xf32, #tpu.memory_space<vmem>>, vector<1x1x8x4xf32>
    %52 = vector.shape_cast %51 : vector<1x1x8x4xf32> to vector<8x4xf32>
    %cst_27 = arith.constant dense<0.000000e+00> : vector<8x256xf32>
    %53 = tpu.matmul %52, %50, %cst_27 {dimension_numbers = #tpu.dot_dimension_numbers<[1], [0], [0], [1], [0, 0, 1, 1], [], []>} : vector<8x4xf32>, vector<4x256xf32>, vector<8x256xf32> -> vector<8x256xf32>
    %54 = arith.addf %49, %53 : vector<8x256xf32>
    %c0_28 = arith.constant 0 : index
    %c113 = arith.constant 113 : index
    %55 = vector.load %arg7[%c0_28, %c113] : memref<4x512xf32, #tpu.memory_space<vmem>>, vector<4x256xf32>
    %cst_29 = arith.constant 0.000000e+00 : f32
    %56 = vector.shape_cast %34 : vector<1x256xi1> to vector<1x256xi1>
    %57 = vector.broadcast %56 : vector<1x256xi1> to vector<4x256xi1>
    %58 = vector.broadcast %cst_29 : f32 to vector<4x256xf32>
    %59 = arith.select %57, %55, %58 : vector<4x256xi1>, vector<4x256xf32>
    %c0_30 = arith.constant 0 : index
    %c2 = arith.constant 2 : index
    %c0_31 = arith.constant 0 : index
    %c0_32 = arith.constant 0 : index
    %60 = vector.load %arg2[%c0_30, %c2, %c0_31, %c0_32] : memref<3x3x8x4xf32, #tpu.memory_space<vmem>>, vector<1x1x8x4xf32>
    %61 = vector.shape_cast %60 : vector<1x1x8x4xf32> to vector<8x4xf32>
    %cst_33 = arith.constant dense<0.000000e+00> : vector<8x256xf32>
    %62 = tpu.matmul %61, %59, %cst_33 {dimension_numbers = #tpu.dot_dimension_numbers<[1], [0], [0], [1], [0, 0, 1, 1], [], []>} : vector<8x4xf32>, vector<4x256xf32>, vector<8x256xf32> -> vector<8x256xf32>
    %63 = arith.addf %54, %62 : vector<8x256xf32>
    %c0_34 = arith.constant 0 : index
    %c127 = arith.constant 127 : index
    %64 = vector.load %arg7[%c0_34, %c127] : memref<4x512xf32, #tpu.memory_space<vmem>>, vector<4x256xf32>
    %cst_35 = arith.constant 0.000000e+00 : f32
    %65 = vector.shape_cast %25 : vector<1x256xi1> to vector<1x256xi1>
    %66 = vector.broadcast %65 : vector<1x256xi1> to vector<4x256xi1>
    %67 = vector.broadcast %cst_35 : f32 to vector<4x256xf32>
    %68 = arith.select %66, %64, %67 : vector<4x256xi1>, vector<4x256xf32>
    %c1_36 = arith.constant 1 : index
    %c0_37 = arith.constant 0 : index
    %c0_38 = arith.constant 0 : index
    %c0_39 = arith.constant 0 : index
    %69 = vector.load %arg2[%c1_36, %c0_37, %c0_38, %c0_39] : memref<3x3x8x4xf32, #tpu.memory_space<vmem>>, vector<1x1x8x4xf32>
    %70 = vector.shape_cast %69 : vector<1x1x8x4xf32> to vector<8x4xf32>
    %cst_40 = arith.constant dense<0.000000e+00> : vector<8x256xf32>
    %71 = tpu.matmul %70, %68, %cst_40 {dimension_numbers = #tpu.dot_dimension_numbers<[1], [0], [0], [1], [0, 0, 1, 1], [], []>} : vector<8x4xf32>, vector<4x256xf32>, vector<8x256xf32> -> vector<8x256xf32>
    %72 = arith.addf %63, %71 : vector<8x256xf32>
    %c0_41 = arith.constant 0 : index
    %c128_42 = arith.constant 128 : index
    %73 = vector.load %arg7[%c0_41, %c128_42] : memref<4x512xf32, #tpu.memory_space<vmem>>, vector<4x256xf32>
    %c1_43 = arith.constant 1 : index
    %c1_44 = arith.constant 1 : index
    %c0_45 = arith.constant 0 : index
    %c0_46 = arith.constant 0 : index
    %74 = vector.load %arg2[%c1_43, %c1_44, %c0_45, %c0_46] : memref<3x3x8x4xf32, #tpu.memory_space<vmem>>, vector<1x1x8x4xf32>
    %75 = vector.shape_cast %74 : vector<1x1x8x4xf32> to vector<8x4xf32>
    %cst_47 = arith.constant dense<0.000000e+00> : vector<8x256xf32>
    %76 = tpu.matmul %75, %73, %cst_47 {dimension_numbers = #tpu.dot_dimension_numbers<[1], [0], [0], [1], [0, 0, 1, 1], [], []>} : vector<8x4xf32>, vector<4x256xf32>, vector<8x256xf32> -> vector<8x256xf32>
    %77 = arith.addf %72, %76 : vector<8x256xf32>
    %c0_48 = arith.constant 0 : index
    %c129 = arith.constant 129 : index
    %78 = vector.load %arg7[%c0_48, %c129] : memref<4x512xf32, #tpu.memory_space<vmem>>, vector<4x256xf32>
    %cst_49 = arith.constant 0.000000e+00 : f32
    %79 = vector.shape_cast %34 : vector<1x256xi1> to vector<1x256xi1>
    %80 = vector.broadcast %79 : vector<1x256xi1> to vector<4x256xi1>
    %81 = vector.broadcast %cst_49 : f32 to vector<4x256xf32>
    %82 = arith.select %80, %78, %81 : vector<4x256xi1>, vector<4x256xf32>
    %c1_50 = arith.constant 1 : index
    %c2_51 = arith.constant 2 : index
    %c0_52 = arith.constant 0 : index
    %c0_53 = arith.constant 0 : index
    %83 = vector.load %arg2[%c1_50, %c2_51, %c0_52, %c0_53] : memref<3x3x8x4xf32, #tpu.memory_space<vmem>>, vector<1x1x8x4xf32>
    %84 = vector.shape_cast %83 : vector<1x1x8x4xf32> to vector<8x4xf32>
    %cst_54 = arith.constant dense<0.000000e+00> : vector<8x256xf32>
    %85 = tpu.matmul %84, %82, %cst_54 {dimension_numbers = #tpu.dot_dimension_numbers<[1], [0], [0], [1], [0, 0, 1, 1], [], []>} : vector<8x4xf32>, vector<4x256xf32>, vector<8x256xf32> -> vector<8x256xf32>
    %86 = arith.addf %77, %85 : vector<8x256xf32>
    %c0_55 = arith.constant 0 : index
    %c143 = arith.constant 143 : index
    %87 = vector.load %arg7[%c0_55, %c143] : memref<4x512xf32, #tpu.memory_space<vmem>>, vector<4x256xf32>
    %cst_56 = arith.constant 0.000000e+00 : f32
    %88 = vector.shape_cast %25 : vector<1x256xi1> to vector<1x256xi1>
    %89 = vector.broadcast %88 : vector<1x256xi1> to vector<4x256xi1>
    %90 = vector.broadcast %cst_56 : f32 to vector<4x256xf32>
    %91 = arith.select %89, %87, %90 : vector<4x256xi1>, vector<4x256xf32>
    %c2_57 = arith.constant 2 : index
    %c0_58 = arith.constant 0 : index
    %c0_59 = arith.constant 0 : index
    %c0_60 = arith.constant 0 : index
    %92 = vector.load %arg2[%c2_57, %c0_58, %c0_59, %c0_60] : memref<3x3x8x4xf32, #tpu.memory_space<vmem>>, vector<1x1x8x4xf32>
    %93 = vector.shape_cast %92 : vector<1x1x8x4xf32> to vector<8x4xf32>
    %cst_61 = arith.constant dense<0.000000e+00> : vector<8x256xf32>
    %94 = tpu.matmul %93, %91, %cst_61 {dimension_numbers = #tpu.dot_dimension_numbers<[1], [0], [0], [1], [0, 0, 1, 1], [], []>} : vector<8x4xf32>, vector<4x256xf32>, vector<8x256xf32> -> vector<8x256xf32>
    %95 = arith.addf %86, %94 : vector<8x256xf32>
    %c0_62 = arith.constant 0 : index
    %c144 = arith.constant 144 : index
    %96 = vector.load %arg7[%c0_62, %c144] : memref<4x512xf32, #tpu.memory_space<vmem>>, vector<4x256xf32>
    %c2_63 = arith.constant 2 : index
    %c1_64 = arith.constant 1 : index
    %c0_65 = arith.constant 0 : index
    %c0_66 = arith.constant 0 : index
    %97 = vector.load %arg2[%c2_63, %c1_64, %c0_65, %c0_66] : memref<3x3x8x4xf32, #tpu.memory_space<vmem>>, vector<1x1x8x4xf32>
    %98 = vector.shape_cast %97 : vector<1x1x8x4xf32> to vector<8x4xf32>
    %cst_67 = arith.constant dense<0.000000e+00> : vector<8x256xf32>
    %99 = tpu.matmul %98, %96, %cst_67 {dimension_numbers = #tpu.dot_dimension_numbers<[1], [0], [0], [1], [0, 0, 1, 1], [], []>} : vector<8x4xf32>, vector<4x256xf32>, vector<8x256xf32> -> vector<8x256xf32>
    %100 = arith.addf %95, %99 : vector<8x256xf32>
    %c0_68 = arith.constant 0 : index
    %c145 = arith.constant 145 : index
    %101 = vector.load %arg7[%c0_68, %c145] : memref<4x512xf32, #tpu.memory_space<vmem>>, vector<4x256xf32>
    %cst_69 = arith.constant 0.000000e+00 : f32
    %102 = vector.shape_cast %34 : vector<1x256xi1> to vector<1x256xi1>
    %103 = vector.broadcast %102 : vector<1x256xi1> to vector<4x256xi1>
    %104 = vector.broadcast %cst_69 : f32 to vector<4x256xf32>
    %105 = arith.select %103, %101, %104 : vector<4x256xi1>, vector<4x256xf32>
    %c2_70 = arith.constant 2 : index
    %c2_71 = arith.constant 2 : index
    %c0_72 = arith.constant 0 : index
    %c0_73 = arith.constant 0 : index
    %106 = vector.load %arg2[%c2_70, %c2_71, %c0_72, %c0_73] : memref<3x3x8x4xf32, #tpu.memory_space<vmem>>, vector<1x1x8x4xf32>
    %107 = vector.shape_cast %106 : vector<1x1x8x4xf32> to vector<8x4xf32>
    %cst_74 = arith.constant dense<0.000000e+00> : vector<8x256xf32>
    %108 = tpu.matmul %107, %105, %cst_74 {dimension_numbers = #tpu.dot_dimension_numbers<[1], [0], [0], [1], [0, 0, 1, 1], [], []>} : vector<8x4xf32>, vector<4x256xf32>, vector<8x256xf32> -> vector<8x256xf32>
    %109 = arith.addf %100, %108 : vector<8x256xf32>
    %c0_75 = arith.constant 0 : index
    %c0_76 = arith.constant 0 : index
    %110 = vector.load %arg3[%c0_75, %c0_76] : memref<8x1xf32, #tpu.memory_space<vmem>>, vector<8x1xf32>
    %111 = vector.broadcast %110 : vector<8x1xf32> to vector<8x256xf32>
    %112 = arith.addf %109, %111 : vector<8x256xf32>
    %cst_77 = arith.constant 0.000000e+00 : f32
    %113 = vector.broadcast %cst_77 : f32 to vector<8x256xf32>
    %114 = arith.maximumf %112, %113 : vector<8x256xf32>
    %cst_78 = arith.constant 0.000000e+00 : f32
    %115 = vector.broadcast %cst_78 : f32 to vector<8x512xf32>
    %c0_79 = arith.constant 0 : index
    %c0_80 = arith.constant 0 : index
    %116 = vector.load %arg8[%c0_79, %c0_80] : memref<8x512xf32, #tpu.memory_space<vmem>>, vector<8x512xf32>
    tpu.vector_store %arg8[%c0_79, %c0_80], %115 {strides = array<i32>} : memref<8x512xf32, #tpu.memory_space<vmem>>, vector<8x512xf32>,
    %c0_81 = arith.constant 0 : index
    %c128_82 = arith.constant 128 : index
    %117 = vector.load %arg8[%c0_81, %c128_82] : memref<8x512xf32, #tpu.memory_space<vmem>>, vector<8x256xf32>
    tpu.vector_store %arg8[%c0_81, %c128_82], %114 {strides = array<i32>} : memref<8x512xf32, #tpu.memory_space<vmem>>, vector<8x256xf32>,
    %cst_83 = arith.constant 0.000000e+00 : f32
    %118 = vector.broadcast %cst_83 : f32 to vector<8x256xf32>
    %c0_84 = arith.constant 0 : index
    %c111_85 = arith.constant 111 : index
    %119 = vector.load %arg8[%c0_84, %c111_85] : memref<8x512xf32, #tpu.memory_space<vmem>>, vector<8x256xf32>
    %cst_86 = arith.constant 0.000000e+00 : f32
    %120 = vector.shape_cast %25 : vector<1x256xi1> to vector<1x256xi1>
    %121 = vector.broadcast %120 : vector<1x256xi1> to vector<8x256xi1>
    %122 = vector.broadcast %cst_86 : f32 to vector<8x256xf32>
    %123 = arith.select %121, %119, %122 : vector<8x256xi1>, vector<8x256xf32>
    %c0_87 = arith.constant 0 : index
    %c0_88 = arith.constant 0 : index
    %c0_89 = arith.constant 0 : index
    %c0_90 = arith.constant 0 : index
    %124 = vector.load %arg4[%c0_87, %c0_88, %c0_89, %c0_90] : memref<3x3x8x8xf32, #tpu.memory_space<vmem>>, vector<1x1x8x8xf32>
    %125 = vector.shape_cast %124 : vector<1x1x8x8xf32> to vector<8x8xf32>
    %cst_91 = arith.constant dense<0.000000e+00> : vector<8x256xf32>
    %126 = tpu.matmul %125, %123, %cst_91 {dimension_numbers = #tpu.dot_dimension_numbers<[1], [0], [0], [1], [0, 0, 1, 1], [], []>} : vector<8x8xf32>, vector<8x256xf32>, vector<8x256xf32> -> vector<8x256xf32>
    %127 = arith.addf %118, %126 : vector<8x256xf32>
    %c0_92 = arith.constant 0 : index
    %c112_93 = arith.constant 112 : index
    %128 = vector.load %arg8[%c0_92, %c112_93] : memref<8x512xf32, #tpu.memory_space<vmem>>, vector<8x256xf32>
    %c0_94 = arith.constant 0 : index
    %c1_95 = arith.constant 1 : index
    %c0_96 = arith.constant 0 : index
    %c0_97 = arith.constant 0 : index
    %129 = vector.load %arg4[%c0_94, %c1_95, %c0_96, %c0_97] : memref<3x3x8x8xf32, #tpu.memory_space<vmem>>, vector<1x1x8x8xf32>
    %130 = vector.shape_cast %129 : vector<1x1x8x8xf32> to vector<8x8xf32>
    %cst_98 = arith.constant dense<0.000000e+00> : vector<8x256xf32>
    %131 = tpu.matmul %130, %128, %cst_98 {dimension_numbers = #tpu.dot_dimension_numbers<[1], [0], [0], [1], [0, 0, 1, 1], [], []>} : vector<8x8xf32>, vector<8x256xf32>, vector<8x256xf32> -> vector<8x256xf32>
    %132 = arith.addf %127, %131 : vector<8x256xf32>
    %c0_99 = arith.constant 0 : index
    %c113_100 = arith.constant 113 : index
    %133 = vector.load %arg8[%c0_99, %c113_100] : memref<8x512xf32, #tpu.memory_space<vmem>>, vector<8x256xf32>
    %cst_101 = arith.constant 0.000000e+00 : f32
    %134 = vector.shape_cast %34 : vector<1x256xi1> to vector<1x256xi1>
    %135 = vector.broadcast %134 : vector<1x256xi1> to vector<8x256xi1>
    %136 = vector.broadcast %cst_101 : f32 to vector<8x256xf32>
    %137 = arith.select %135, %133, %136 : vector<8x256xi1>, vector<8x256xf32>
    %c0_102 = arith.constant 0 : index
    %c2_103 = arith.constant 2 : index
    %c0_104 = arith.constant 0 : index
    %c0_105 = arith.constant 0 : index
    %138 = vector.load %arg4[%c0_102, %c2_103, %c0_104, %c0_105] : memref<3x3x8x8xf32, #tpu.memory_space<vmem>>, vector<1x1x8x8xf32>
    %139 = vector.shape_cast %138 : vector<1x1x8x8xf32> to vector<8x8xf32>
    %cst_106 = arith.constant dense<0.000000e+00> : vector<8x256xf32>
    %140 = tpu.matmul %139, %137, %cst_106 {dimension_numbers = #tpu.dot_dimension_numbers<[1], [0], [0], [1], [0, 0, 1, 1], [], []>} : vector<8x8xf32>, vector<8x256xf32>, vector<8x256xf32> -> vector<8x256xf32>
    %141 = arith.addf %132, %140 : vector<8x256xf32>
    %c0_107 = arith.constant 0 : index
    %c127_108 = arith.constant 127 : index
    %142 = vector.load %arg8[%c0_107, %c127_108] : memref<8x512xf32, #tpu.memory_space<vmem>>, vector<8x256xf32>
    %cst_109 = arith.constant 0.000000e+00 : f32
    %143 = vector.shape_cast %25 : vector<1x256xi1> to vector<1x256xi1>
    %144 = vector.broadcast %143 : vector<1x256xi1> to vector<8x256xi1>
    %145 = vector.broadcast %cst_109 : f32 to vector<8x256xf32>
    %146 = arith.select %144, %142, %145 : vector<8x256xi1>, vector<8x256xf32>
    %c1_110 = arith.constant 1 : index
    %c0_111 = arith.constant 0 : index
    %c0_112 = arith.constant 0 : index
    %c0_113 = arith.constant 0 : index
    %147 = vector.load %arg4[%c1_110, %c0_111, %c0_112, %c0_113] : memref<3x3x8x8xf32, #tpu.memory_space<vmem>>, vector<1x1x8x8xf32>
    %148 = vector.shape_cast %147 : vector<1x1x8x8xf32> to vector<8x8xf32>
    %cst_114 = arith.constant dense<0.000000e+00> : vector<8x256xf32>
    %149 = tpu.matmul %148, %146, %cst_114 {dimension_numbers = #tpu.dot_dimension_numbers<[1], [0], [0], [1], [0, 0, 1, 1], [], []>} : vector<8x8xf32>, vector<8x256xf32>, vector<8x256xf32> -> vector<8x256xf32>
    %150 = arith.addf %141, %149 : vector<8x256xf32>
    %c0_115 = arith.constant 0 : index
    %c128_116 = arith.constant 128 : index
    %151 = vector.load %arg8[%c0_115, %c128_116] : memref<8x512xf32, #tpu.memory_space<vmem>>, vector<8x256xf32>
    %c1_117 = arith.constant 1 : index
    %c1_118 = arith.constant 1 : index
    %c0_119 = arith.constant 0 : index
    %c0_120 = arith.constant 0 : index
    %152 = vector.load %arg4[%c1_117, %c1_118, %c0_119, %c0_120] : memref<3x3x8x8xf32, #tpu.memory_space<vmem>>, vector<1x1x8x8xf32>
    %153 = vector.shape_cast %152 : vector<1x1x8x8xf32> to vector<8x8xf32>
    %cst_121 = arith.constant dense<0.000000e+00> : vector<8x256xf32>
    %154 = tpu.matmul %153, %151, %cst_121 {dimension_numbers = #tpu.dot_dimension_numbers<[1], [0], [0], [1], [0, 0, 1, 1], [], []>} : vector<8x8xf32>, vector<8x256xf32>, vector<8x256xf32> -> vector<8x256xf32>
    %155 = arith.addf %150, %154 : vector<8x256xf32>
    %c0_122 = arith.constant 0 : index
    %c129_123 = arith.constant 129 : index
    %156 = vector.load %arg8[%c0_122, %c129_123] : memref<8x512xf32, #tpu.memory_space<vmem>>, vector<8x256xf32>
    %cst_124 = arith.constant 0.000000e+00 : f32
    %157 = vector.shape_cast %34 : vector<1x256xi1> to vector<1x256xi1>
    %158 = vector.broadcast %157 : vector<1x256xi1> to vector<8x256xi1>
    %159 = vector.broadcast %cst_124 : f32 to vector<8x256xf32>
    %160 = arith.select %158, %156, %159 : vector<8x256xi1>, vector<8x256xf32>
    %c1_125 = arith.constant 1 : index
    %c2_126 = arith.constant 2 : index
    %c0_127 = arith.constant 0 : index
    %c0_128 = arith.constant 0 : index
    %161 = vector.load %arg4[%c1_125, %c2_126, %c0_127, %c0_128] : memref<3x3x8x8xf32, #tpu.memory_space<vmem>>, vector<1x1x8x8xf32>
    %162 = vector.shape_cast %161 : vector<1x1x8x8xf32> to vector<8x8xf32>
    %cst_129 = arith.constant dense<0.000000e+00> : vector<8x256xf32>
    %163 = tpu.matmul %162, %160, %cst_129 {dimension_numbers = #tpu.dot_dimension_numbers<[1], [0], [0], [1], [0, 0, 1, 1], [], []>} : vector<8x8xf32>, vector<8x256xf32>, vector<8x256xf32> -> vector<8x256xf32>
    %164 = arith.addf %155, %163 : vector<8x256xf32>
    %c0_130 = arith.constant 0 : index
    %c143_131 = arith.constant 143 : index
    %165 = vector.load %arg8[%c0_130, %c143_131] : memref<8x512xf32, #tpu.memory_space<vmem>>, vector<8x256xf32>
    %cst_132 = arith.constant 0.000000e+00 : f32
    %166 = vector.shape_cast %25 : vector<1x256xi1> to vector<1x256xi1>
    %167 = vector.broadcast %166 : vector<1x256xi1> to vector<8x256xi1>
    %168 = vector.broadcast %cst_132 : f32 to vector<8x256xf32>
    %169 = arith.select %167, %165, %168 : vector<8x256xi1>, vector<8x256xf32>
    %c2_133 = arith.constant 2 : index
    %c0_134 = arith.constant 0 : index
    %c0_135 = arith.constant 0 : index
    %c0_136 = arith.constant 0 : index
    %170 = vector.load %arg4[%c2_133, %c0_134, %c0_135, %c0_136] : memref<3x3x8x8xf32, #tpu.memory_space<vmem>>, vector<1x1x8x8xf32>
    %171 = vector.shape_cast %170 : vector<1x1x8x8xf32> to vector<8x8xf32>
    %cst_137 = arith.constant dense<0.000000e+00> : vector<8x256xf32>
    %172 = tpu.matmul %171, %169, %cst_137 {dimension_numbers = #tpu.dot_dimension_numbers<[1], [0], [0], [1], [0, 0, 1, 1], [], []>} : vector<8x8xf32>, vector<8x256xf32>, vector<8x256xf32> -> vector<8x256xf32>
    %173 = arith.addf %164, %172 : vector<8x256xf32>
    %c0_138 = arith.constant 0 : index
    %c144_139 = arith.constant 144 : index
    %174 = vector.load %arg8[%c0_138, %c144_139] : memref<8x512xf32, #tpu.memory_space<vmem>>, vector<8x256xf32>
    %c2_140 = arith.constant 2 : index
    %c1_141 = arith.constant 1 : index
    %c0_142 = arith.constant 0 : index
    %c0_143 = arith.constant 0 : index
    %175 = vector.load %arg4[%c2_140, %c1_141, %c0_142, %c0_143] : memref<3x3x8x8xf32, #tpu.memory_space<vmem>>, vector<1x1x8x8xf32>
    %176 = vector.shape_cast %175 : vector<1x1x8x8xf32> to vector<8x8xf32>
    %cst_144 = arith.constant dense<0.000000e+00> : vector<8x256xf32>
    %177 = tpu.matmul %176, %174, %cst_144 {dimension_numbers = #tpu.dot_dimension_numbers<[1], [0], [0], [1], [0, 0, 1, 1], [], []>} : vector<8x8xf32>, vector<8x256xf32>, vector<8x256xf32> -> vector<8x256xf32>
    %178 = arith.addf %173, %177 : vector<8x256xf32>
    %c0_145 = arith.constant 0 : index
    %c145_146 = arith.constant 145 : index
    %179 = vector.load %arg8[%c0_145, %c145_146] : memref<8x512xf32, #tpu.memory_space<vmem>>, vector<8x256xf32>
    %cst_147 = arith.constant 0.000000e+00 : f32
    %180 = vector.shape_cast %34 : vector<1x256xi1> to vector<1x256xi1>
    %181 = vector.broadcast %180 : vector<1x256xi1> to vector<8x256xi1>
    %182 = vector.broadcast %cst_147 : f32 to vector<8x256xf32>
    %183 = arith.select %181, %179, %182 : vector<8x256xi1>, vector<8x256xf32>
    %c2_148 = arith.constant 2 : index
    %c2_149 = arith.constant 2 : index
    %c0_150 = arith.constant 0 : index
    %c0_151 = arith.constant 0 : index
    %184 = vector.load %arg4[%c2_148, %c2_149, %c0_150, %c0_151] : memref<3x3x8x8xf32, #tpu.memory_space<vmem>>, vector<1x1x8x8xf32>
    %185 = vector.shape_cast %184 : vector<1x1x8x8xf32> to vector<8x8xf32>
    %cst_152 = arith.constant dense<0.000000e+00> : vector<8x256xf32>
    %186 = tpu.matmul %185, %183, %cst_152 {dimension_numbers = #tpu.dot_dimension_numbers<[1], [0], [0], [1], [0, 0, 1, 1], [], []>} : vector<8x8xf32>, vector<8x256xf32>, vector<8x256xf32> -> vector<8x256xf32>
    %187 = arith.addf %178, %186 : vector<8x256xf32>
    %c0_153 = arith.constant 0 : index
    %c0_154 = arith.constant 0 : index
    %188 = vector.load %arg5[%c0_153, %c0_154] : memref<8x1xf32, #tpu.memory_space<vmem>>, vector<8x1xf32>
    %189 = vector.broadcast %188 : vector<8x1xf32> to vector<8x256xf32>
    %190 = arith.addf %187, %189 : vector<8x256xf32>
    %cst_155 = arith.constant 0.000000e+00 : f32
    %191 = vector.broadcast %cst_155 : f32 to vector<8x256xf32>
    %192 = arith.maximumf %190, %191 : vector<8x256xf32>
    %c0_156 = arith.constant 0 : index
    %c0_157 = arith.constant 0 : index
    %c0_158 = arith.constant 0 : index
    %193 = vector.load %arg6[%c0_156, %c0_157, %c0_158] : memref<1x8x256xf32, #tpu.memory_space<vmem>>, vector<1x8x256xf32>
    %194 = vector.shape_cast %193 : vector<1x8x256xf32> to vector<8x256xf32>
    %195 = vector.shape_cast %192 : vector<8x256xf32> to vector<1x8x256xf32>
    tpu.vector_store %arg6[%c0_156, %c0_157, %c0_158], %195 {strides = array<i32>} : memref<1x8x256xf32, #tpu.memory_space<vmem>>, vector<1x8x256xf32>,
    return
  }
  func.func @transform_0(%arg0: i32) -> (i32, i32, i32) {
    %c0_i32 = arith.constant 0 : i32
    %c0_i32_0 = arith.constant 0 : i32
    %c0_i32_1 = arith.constant 0 : i32
    return %arg0, %c0_i32, %c0_i32_0 : i32, i32, i32
  }
  func.func @transform_1(%arg0: i32) -> (i32, i32, i32, i32) {
    %c0_i32 = arith.constant 0 : i32
    %c0_i32_0 = arith.constant 0 : i32
    %c0_i32_1 = arith.constant 0 : i32
    %c0_i32_2 = arith.constant 0 : i32
    %c0_i32_3 = arith.constant 0 : i32
    return %c0_i32, %c0_i32_0, %c0_i32_1, %c0_i32_2 : i32, i32, i32, i32
  }
  func.func @transform_2(%arg0: i32) -> (i32, i32) {
    %c0_i32 = arith.constant 0 : i32
    %c0_i32_0 = arith.constant 0 : i32
    %c0_i32_1 = arith.constant 0 : i32
    return %c0_i32, %c0_i32_0 : i32, i32
  }
  func.func @transform_3(%arg0: i32) -> (i32, i32, i32, i32) {
    %c0_i32 = arith.constant 0 : i32
    %c0_i32_0 = arith.constant 0 : i32
    %c0_i32_1 = arith.constant 0 : i32
    %c0_i32_2 = arith.constant 0 : i32
    %c0_i32_3 = arith.constant 0 : i32
    return %c0_i32, %c0_i32_0, %c0_i32_1, %c0_i32_2 : i32, i32, i32, i32
  }
  func.func @transform_4(%arg0: i32) -> (i32, i32) {
    %c0_i32 = arith.constant 0 : i32
    %c0_i32_0 = arith.constant 0 : i32
    %c0_i32_1 = arith.constant 0 : i32
    return %c0_i32, %c0_i32_0 : i32, i32
  }
  func.func @transform_5(%arg0: i32) -> (i32, i32, i32) {
    %c0_i32 = arith.constant 0 : i32
    %c0_i32_0 = arith.constant 0 : i32
    %c0_i32_1 = arith.constant 0 : i32
    return %arg0, %c0_i32, %c0_i32_0 : i32, i32, i32
  }
}

</mosaic_0001>

<llo_original>
// kernel: tpu_custom_call.1
$region0: #{tpu_custom_call.1}
  #allocation0 [shape = 'u32[]', space=smem, size = 0x4, offset = 0x4, fixed_abs, tag = 'smem constant byte address 0x4 - core index']
  #allocation1 [shape = 'u32[144,128]{1,0:T(1,128)}', space=vmem, size = 0x12000, scoped, tag = 'internal scratch']
  #allocation2 [shape = 'f32[4,512]{1,0:T(4,128)}', space=vmem, size = 0x2000, scoped, tag = 'scratch operand']
  #allocation3 [shape = 'f32[8,512]{1,0:T(8,128)}', space=vmem, size = 0x4000, scoped, tag = 'scratch operand']
  %s0 = inlined_call_operand.vmem [shape: f32[2,4,256], index: 0, kind: input, shape index: {}]
  %s1 = inlined_call_operand.vmem [shape: f32[3,3,8,4], index: 1, kind: input, shape index: {}]
  %s2 = inlined_call_operand.vmem [shape: f32[8,1], index: 2, kind: input, shape index: {}]
  %s3 = inlined_call_operand.vmem [shape: f32[3,3,8,8], index: 3, kind: input, shape index: {}]
  %s4 = inlined_call_operand.vmem [shape: f32[8,1], index: 4, kind: input, shape index: {}]
  %s5 = inlined_call_operand.hbm [shape: f32[2,8,256], index: 5, kind: output, shape index: {}]
  %s6 = sld [smem:[#allocation0]]
  $region53: #{tpu_custom_call.1} parent=0
    _
  %s8 = ssub.s32 1, %s6
  %s9 = scalar_select 0, %s8, %s6
  $region1: #{tpu_custom_call.1} parent=0
    #allocation4 [shape = 'u8[16384]{0}', space=vmem, size = 0x4000, scoped, tag = 'output window, operand 0']
    #allocation5 [shape = 's32[2]{0}', space=sflag, size = 0x8, scoped, tag = 'scoped memory for tpu_custom_call.1']
    %10 = vsyncpa [#allocation5], 0
    %s11 = scalar_lea.sflag [#allocation5], 1
    %12 = vsyncpa %s11, 0
    loop: start=0, step=1, limit=4
    $region2: #{tpu_custom_call.1} parent=1 // loop_pre_header
      _
    $region3: #{tpu_custom_call.1} parent=1 // loop_header
      %s14 = sphi 0, %s18
      %p15 = scmp.ge.s32.totalorder %s14, 4
      %s24 = sphi 0, %s26
      %s27 = sphi 0, %s24
      %s28 = sphi 0, %s27
      %s44 = sphi 0, %s28
      %s48 = sphi 0, %s48
      %s50 = sphi 0, %s48
      %s51 = sphi 0, %s50
      %s65 = sphi 0, %s51
      %s69 = sphi 0, %s69
      %s71 = sphi 0, %s69
      %s72 = sphi 0, %s71
      %s86 = sphi 0, %s72
      %s90 = sphi 0, %s90
      %s92 = sphi 0, %s90
      %s93 = sphi 0, %s92
      %s107 = sphi 0, %s93
      %s111 = sphi 0, %s111
      %s113 = sphi 0, %s111
      %s114 = sphi 0, %s113
      %s128 = sphi 0, %s114
      %s134 = sphi 0, %s136
      %s137 = sphi 0, %s134
      %s138 = sphi 0, %s137
      %s154 = sphi 0, %s138
    $region4: #{tpu_custom_call.1} parent=1 // loop_header_branch
      %17 = sbr.rel (%p15) target = $region8
    $region5: #{tpu_custom_call.1} parent=1 // loop_body
      %s19 = ssub.s32 %s14, 1
      %s20 = ssub.s32 %s14, 2
      %s21 = sadd.s32 %s14, 1
      %s22 = ssub.s32 %s14, %s21
      %p23 = scmp.eq.s32.totalorder %s22, 0
      %s25 = sadd.s32 %s24, 1
      %s26 = scalar_select %p23, %s24, %s25
      %p29 = pneg %p23
      %p30 = scmp.eq.s32.totalorder %s14, 1
      %p31 = por %p29, %p30
      %p32 = scmp.ne.s32.totalorder %s24, %s27
      %p33 = scmp.eq.s32.totalorder %s14, 0
      %p34 = por %p32, %p33
      %p35 = scmp.ne.s32.totalorder %s24, %s27
      %p36 = scmp.eq.s32.totalorder %s19, 1
      %p37 = por %p35, %p36
      %p38 = scmp.ne.s32.totalorder %s27, %s28
      %p39 = scmp.eq.s32.totalorder %s19, 0
      %p40 = por %p38, %p39
      %p41 = scmp.ne.s32.totalorder %s27, %s28
      %p42 = scmp.eq.s32.totalorder %s20, 1
      %p43 = por %p41, %p42
      %p45 = scmp.ne.s32.totalorder %s28, %s44
      %p46 = scmp.eq.s32.totalorder %s20, 0
      %p47 = por %p45, %p46
      %s49 = sadd.s32 %s48, 1
      %p52 = scmp.eq.s32.totalorder %s14, 1
      %p53 = scmp.ne.s32.totalorder %s48, %s50
      %p54 = scmp.eq.s32.totalorder %s14, 0
      %p55 = por %p53, %p54
      %p56 = scmp.ne.s32.totalorder %s48, %s50
      %p57 = scmp.eq.s32.totalorder %s19, 1
      %p58 = por %p56, %p57
      %p59 = scmp.ne.s32.totalorder %s50, %s51
      %p60 = scmp.eq.s32.totalorder %s19, 0
      %p61 = por %p59, %p60
      %p62 = scmp.ne.s32.totalorder %s50, %s51
      %p63 = scmp.eq.s32.totalorder %s20, 1
      %p64 = por %p62, %p63
      %p66 = scmp.ne.s32.totalorder %s51, %s65
      %p67 = scmp.eq.s32.totalorder %s20, 0
      %p68 = por %p66, %p67
      %s70 = sadd.s32 %s69, 1
      %p73 = scmp.eq.s32.totalorder %s14, 1
      %p74 = scmp.ne.s32.totalorder %s69, %s71
      %p75 = scmp.eq.s32.totalorder %s14, 0
      %p76 = por %p74, %p75
      %p77 = scmp.ne.s32.totalorder %s69, %s71
      %p78 = scmp.eq.s32.totalorder %s19, 1
      %p79 = por %p77, %p78
      %p80 = scmp.ne.s32.totalorder %s71, %s72
      %p81 = scmp.eq.s32.totalorder %s19, 0
      %p82 = por %p80, %p81
      %p83 = scmp.ne.s32.totalorder %s71, %s72
      %p84 = scmp.eq.s32.totalorder %s20, 1
      %p85 = por %p83, %p84
      %p87 = scmp.ne.s32.totalorder %s72, %s86
      %p88 = scmp.eq.s32.totalorder %s20, 0
      %p89 = por %p87, %p88
      %s91 = sadd.s32 %s90, 1
      %p94 = scmp.eq.s32.totalorder %s14, 1
      %p95 = scmp.ne.s32.totalorder %s90, %s92
      %p96 = scmp.eq.s32.totalorder %s14, 0
      %p97 = por %p95, %p96
      %p98 = scmp.ne.s32.totalorder %s90, %s92
      %p99 = scmp.eq.s32.totalorder %s19, 1
      %p100 = por %p98, %p99
      %p101 = scmp.ne.s32.totalorder %s92, %s93
      %p102 = scmp.eq.s32.totalorder %s19, 0
      %p103 = por %p101, %p102
      %p104 = scmp.ne.s32.totalorder %s92, %s93
      %p105 = scmp.eq.s32.totalorder %s20, 1
      %p106 = por %p104, %p105
      %p108 = scmp.ne.s32.totalorder %s93, %s107
      %p109 = scmp.eq.s32.totalorder %s20, 0
      %p110 = por %p108, %p109
      %s112 = sadd.s32 %s111, 1
      %p115 = scmp.eq.s32.totalorder %s14, 1
      %p116 = scmp.ne.s32.totalorder %s111, %s113
      %p117 = scmp.eq.s32.totalorder %s14, 0
      %p118 = por %p116, %p117
      %p119 = scmp.ne.s32.totalorder %s111, %s113
      %p120 = scmp.eq.s32.totalorder %s19, 1
      %p121 = por %p119, %p120
      %p122 = scmp.ne.s32.totalorder %s113, %s114
      %p123 = scmp.eq.s32.totalorder %s19, 0
      %p124 = por %p122, %p123
      %p125 = scmp.ne.s32.totalorder %s113, %s114
      %p126 = scmp.eq.s32.totalorder %s20, 1
      %p127 = por %p125, %p126
      %p129 = scmp.ne.s32.totalorder %s114, %s128
      %p130 = scmp.eq.s32.totalorder %s20, 0
      %p131 = por %p129, %p130
      %s132 = ssub.s32 %s14, %s21
      %p133 = scmp.eq.s32.totalorder %s132, 0
      %s135 = sadd.s32 %s134, 1
      %s136 = scalar_select %p133, %s134, %s135
      %p139 = pneg %p133
      %p140 = scmp.eq.s32.totalorder %s14, 1
      %p141 = por %p139, %p140
      %p142 = scmp.ne.s32.totalorder %s134, %s137
      %p143 = scmp.eq.s32.totalorder %s14, 0
      %p144 = por %p142, %p143
      %p145 = scmp.ne.s32.totalorder %s134, %s137
      %p146 = scmp.eq.s32.totalorder %s19, 1
      %p147 = por %p145, %p146
      %p148 = scmp.ne.s32.totalorder %s137, %s138
      %p149 = scmp.eq.s32.totalorder %s19, 0
      %p150 = por %p148, %p149
      %p151 = scmp.ne.s32.totalorder %s137, %s138
      %p152 = scmp.eq.s32.totalorder %s20, 1
      %p153 = por %p151, %p152
      %p155 = scmp.ne.s32.totalorder %s138, %s154
      %p156 = scmp.eq.s32.totalorder %s20, 0
      %p157 = por %p155, %p156
      %p158 = scmp.le.s32.totalorder 1, %s14
      %p159 = scmp.lt.s32.totalorder %s14, 3
      %p160 = pnand %p158, %p159
      %p161 = pneg %p160
      // Predicated region
      $region9: #{tpu_custom_call.1} parent=5 // pred_check
        _
      $region10: #{tpu_custom_call.1} parent=5 // pred_check_branch
        %163 = sbr.rel (%p160) target = $region12
      $region11: #{tpu_custom_call.1} parent=5 // pred_region
        %s164 = ssub.s32 %s14, 1
        // Predicated region
        $region13: #{tpu_custom_call.1} parent=11 // pred_check
          %p165 = pneg %p61
        $region14: #{tpu_custom_call.1} parent=11 // pred_check_branch
          %167 = sbr.rel (%p165) target = $region16
        $region15: #{tpu_custom_call.1} parent=11 // pred_region
          _
        $region16: #{tpu_custom_call.1} parent=11 // pred_fallthru
          _
        // Predicated region
        $region17: #{tpu_custom_call.1} parent=11 // pred_check
          %p168 = pneg %p82
        $region18: #{tpu_custom_call.1} parent=11 // pred_check_branch
          %170 = sbr.rel (%p168) target = $region20
        $region19: #{tpu_custom_call.1} parent=11 // pred_region
          _
        $region20: #{tpu_custom_call.1} parent=11 // pred_fallthru
          _
        // Predicated region
        $region21: #{tpu_custom_call.1} parent=11 // pred_check
          %p171 = pneg %p103
        $region22: #{tpu_custom_call.1} parent=11 // pred_check_branch
          %173 = sbr.rel (%p171) target = $region24
        $region23: #{tpu_custom_call.1} parent=11 // pred_region
          _
        $region24: #{tpu_custom_call.1} parent=11 // pred_fallthru
          _
        // Predicated region
        $region25: #{tpu_custom_call.1} parent=11 // pred_check
          %p174 = pneg %p124
        $region26: #{tpu_custom_call.1} parent=11 // pred_check_branch
          %176 = sbr.rel (%p174) target = $region28
        $region27: #{tpu_custom_call.1} parent=11 // pred_region
          _
        $region28: #{tpu_custom_call.1} parent=11 // pred_fallthru
          _
      $region12: #{tpu_custom_call.1} parent=5 // pred_fallthru
        _
      %p177 = scmp.lt.s32.totalorder %s14, 2
      // Predicated region
      $region29: #{tpu_custom_call.1} parent=5 // pred_check
        %p178 = pneg %p177
      $region30: #{tpu_custom_call.1} parent=5 // pred_check_branch
        %180 = sbr.rel (%p178) target = $region32
      $region31: #{tpu_custom_call.1} parent=5 // pred_region
        // Predicated region
        $region33: #{tpu_custom_call.1} parent=31 // pred_check
          %p181 = pneg %p34
        $region34: #{tpu_custom_call.1} parent=31 // pred_check_branch
          %183 = sbr.rel (%p181) target = $region36
        $region35: #{tpu_custom_call.1} parent=31 // pred_region
          %p184 = scmp.lt.s32.totalorder %s14, 1
          %s185 = scalar_select %p184, %s14, 1
          %s186 = smul.addr %s185, 2
          %s187 = smul.addr %s186, 4
          %s188 = scalar_lea.vmem %s0, %s187
        $region36: #{tpu_custom_call.1} parent=31 // pred_fallthru
          _
      $region32: #{tpu_custom_call.1} parent=5 // pred_fallthru
        _
      %p189 = scmp.le.s32.totalorder 1, %s14
      %p190 = scmp.lt.s32.totalorder %s14, 3
      %p191 = pnand %p189, %p190
      %p192 = pneg %p191
      // Predicated region
      $region37: #{tpu_custom_call.1} parent=5 // pred_check
        _
      $region38: #{tpu_custom_call.1} parent=5 // pred_check_branch
        %194 = sbr.rel (%p191) target = $region40
      $region39: #{tpu_custom_call.1} parent=5 // pred_region
        %s195 = ssub.s32 %s14, 1
        %p196 = scmp.lt.s32.totalorder %s19, 1
        %s197 = scalar_select %p196, %s19, 1
        %s198 = smul.addr %s197, 2
        %s199 = smul.addr %s198, 4
        %s200 = scalar_lea.vmem %s0, %s199
        %p201 = pneg %p40
        %p202 = pneg %p37
        %p203 = pneg %p61
        %p204 = pneg %p58
        %p205 = pneg %p82
        %p206 = pneg %p79
        %p207 = pneg %p103
        %p208 = pneg %p100
        %p209 = pneg %p124
        %p210 = pneg %p121
        %p211 = pneg %p150
        %p212 = pneg %p147
        %s213 = sand.u32 %s137, 1
        %s214 = scalar_lea.sflag [#allocation5], %s213
        %s215 = sand.u32 %s137, 1
        %s216 = smul.addr %s215, 16
        %s217 = scalar_lea.vmem [#allocation4], %s216
        %p218 = scmp.lt.s32.totalorder %s19, 1
        %s219 = scalar_select %p218, %s19, 1
        %s220 = smul.addr %s219, 2
        %s221 = smul.addr %s220, 4
        %s222 = scalar_lea.vmem %s0, %s221
        %v223 = vlaneseq
        %v224 = vand.u32 %v223, 127
        %v225 = vadd.s32 %v224, 128
        %vm226 = vcmp.lt.s32.totalorder %v224, 0
        %v227 = vsub.s32 0, %v224
        %v228 = vsel %vm226, %v227, %v224
        %v229 = vshrl.u32 %v228, 4
        %v230 = vand.u32 %v228, 15
        %v231 = vsub.s32 0, %v230
        %v232 = vsel %vm226, %v231, %v230
        %vm233 = vcmp.lt.s32.totalorder %v225, 0
        %v234 = vsub.s32 0, %v225
        %v235 = vsel %vm233, %v234, %v225
        %v236 = vshrl.u32 %v235, 4
        %v237 = vand.u32 %v235, 15
        %v238 = vsub.s32 0, %v237
        %v239 = vsel %vm233, %v238, %v237
        %vm240 = vcmp.ne.s32.totalorder %v232, 0
        %vm241 = vcmp.ne.s32.totalorder %v239, 0
        %vm242 = vcmp.lt.s32.totalorder %v232, 0
        %vm243 = vcmp.lt.s32.totalorder %v239, 0
        %vm244 = vmand %vm242, %vm240
        %vm245 = vmand %vm243, %vm241
        %v246 = vadd.s32 %v232, 16
        %v247 = vadd.s32 %v239, 16
        %v248 = vsel %vm244, %v246, %v232
        %v249 = vsel %vm245, %v247, %v239
        %v250 = vadd.s32 %v248, 4294967295
        %v251 = vadd.s32 %v249, 4294967295
        %vm252 = vcmp.ge.s32.totalorder %v250, 0
        %vm253 = vcmp.ge.s32.totalorder %v251, 0
        %vm254 = vcmp.lt.s32.totalorder %v250, 16
        %vm255 = vcmp.lt.s32.totalorder %v251, 16
        %vm256 = vmand %vm252, %vm254
        %vm257 = vmand %vm253, %vm255
        %v258 = vadd.s32 %v248, 1
        %v259 = vadd.s32 %v249, 1
        %vm260 = vcmp.ge.s32.totalorder %v258, 0
        %vm261 = vcmp.ge.s32.totalorder %v259, 0
        %vm262 = vcmp.lt.s32.totalorder %v258, 16
        %vm263 = vcmp.lt.s32.totalorder %v259, 16
        %vm264 = vmand %vm260, %vm262
        %vm265 = vmand %vm261, %vm263
        %v266 = vld [vmem:[%s222] sm:$0xff]
        %267 = vst [vmem:[#allocation2] sm:$0xff] 0.0
        %268 = vst [vmem:[#allocation2 + $0x8] sm:$0xff] 0.0
        %269 = vst [vmem:[#allocation2 + $0x4] sm:$0xff] %v266
        %v270 = vld [vmem:[#allocation2] sm:$0xff]
        %v271 = vld [vmem:[#allocation2 + $0x8] sm:$0xf]
        %v272 = vsel %vm256, 1, 0
        %v273 = vsel %vm257, 1, 0
        %vm274 = vcmp.eq.s32.totalorder %v272, 1
        %vm275 = vcmp.eq.s32.totalorder %v273, 1
        %v278 = vcombine.high %v270, %v270
        %279 = vrot.lane.b32.xlu0 %v270, 17
        %v280 = vpop.permute.xlu0 %279
        %281 = vrot.lane.b32.xlu0 %v278, 17
        %v282 = vpop.permute.xlu0 %281
        %283 = vrot.lane.b32.xlu0 %v271, 17
        %v284 = vpop.permute.xlu0 %283
        %vm285 = vcmask 138240
        %v286 = vsel %vm285, %v280, %v282
        %v287 = vsel %vm285, %v282, %v284
        %v290 = vsel %vm274, %v286, 0.0
        %v291 = vsel %vm275, %v287, 0.0
        %v292 = vld [vmem:[%s1] sm:$0xff]
        %s293 = scalar_lea.vmem %s1, 8
        %v294 = vld [vmem:[%s293] sm:$0xff]
        %295 = vrot.lane.b32.xlu0 %v270, 16
        %v296 = vpop.permute.xlu0 %295
        %297 = vrot.lane.b32.xlu0 %v278, 16
        %v298 = vpop.permute.xlu0 %297
        %299 = vrot.lane.b32.xlu0 %v271, 16
        %v300 = vpop.permute.xlu0 %299
        %vm301 = vcmask 130048
        %v302 = vsel %vm301, %v296, %v298
        %v303 = vsel %vm301, %v298, %v300
        %vm304 = vcmask 31744
        %v306 = vsel %vm304, %v294, 0
        %vm308 = vcmask 1043456
        %v309 = vsel %vm308, %v302, 0
        %v311 = vsel %vm308, %v303, 0
        %313 = vmatprep.subr.mxu0 %v311
        %314 = vmatpush1.msra.mxu0 %v309
        %315 = vmatprep.subr.mxu0 0.0
        %316 = vmatpush1.msra.mxu0 0.0
        %317 = vmatprep.subr.mxu0 0.0
        %318 = vmatpush1.msra.mxu0 0.0
        %319 = vmatprep.subr.mxu0 0.0
        %320 = vmatpush1.msra.mxu0 0.0
        %321 = vmatprep.subr.mxu0 0.0
        %322 = vmatpush1.msra.mxu0 0.0
        %323 = vmatprep.subr.mxu0 0.0
        %324 = vmatpush1.msra.mxu0 0.0
        %325 = vmatprep.subr.mxu0 0.0
        %326 = vmatpush1.msra.mxu0 0.0
        %327 = vmatprep.subr.mxu0 0.0
        %328 = vmatpush1.msra.mxu0 0.0
        %329 = vmatprep.subr.mxu0 0.0
        %330 = vmatpush1.msra.mxu0 0.0
        %331 = vmatprep.subr.mxu0 0.0
        %332 = vmatpush1.msra.mxu0 0.0
        %333 = vmatprep.subr.mxu0 0.0
        %334 = vmatpush1.msra.mxu0 0.0
        %335 = vmatprep.subr.mxu0 0.0
        %336 = vmatpush1.msra.mxu0 0.0
        %337 = vmatprep.subr.mxu0 0.0
        %338 = vmatpush1.msra.mxu0 0.0
        %339 = vmatprep.subr.mxu0 0.0
        %340 = vmatpush1.msra.mxu0 0.0
        %341 = vmatprep.subr.mxu0 0.0
        %342 = vmatpush1.msra.mxu0 0.0
        %343 = vmatprep.subr.mxu0 0.0
        %344 = vmatpush1.msra.mxu0 0.0
        %345 = vmatprep.subr.mxu0 0.0
        %346 = vmatpush1.msra.mxu0 0.0
        %347 = vmatprep.subr.mxu0 0.0
        %348 = vmatpush1.msra.mxu0 0.0
        %349 = vmatprep.subr.mxu0 0.0
        %350 = vmatpush1.msra.mxu0 0.0
        %351 = vmatprep.subr.mxu0 0.0
        %352 = vmatpush1.msra.mxu0 0.0
        %353 = vmatprep.subr.mxu0 0.0
        %354 = vmatpush1.msra.mxu0 0.0
        %355 = vmatprep.subr.mxu0 0.0
        %356 = vmatpush1.msra.mxu0 0.0
        %357 = vmatprep.subr.mxu0 0.0
        %358 = vmatpush1.msra.mxu0 0.0
        %359 = vmatprep.subr.mxu0 0.0
        %360 = vmatpush1.msra.mxu0 0.0
        %361 = vmatprep.subr.mxu0 0.0
        %362 = vmatpush1.msra.mxu0 0.0
        %363 = vmatprep.subr.mxu0 0.0
        %364 = vmatpush1.msra.mxu0 0.0
        %365 = vmatprep.subr.mxu0 0.0
        %366 = vmatpush1.msra.mxu0 0.0
        %367 = vmatprep.subr.mxu0 0.0
        %368 = vmatpush1.msra.mxu0 0.0
        %369 = vmatprep.subr.mxu0 0.0
        %370 = vmatpush1.msra.mxu0 0.0
        %371 = vmatprep.subr.mxu0 0.0
        %372 = vmatpush1.msra.mxu0 0.0
        %373 = vmatprep.subr.mxu0 0.0
        %374 = vmatpush1.msra.mxu0 0.0
        %375 = vmatprep.subr.mxu0 0.0
        %376 = vmatpush1.msra.mxu0 0.0
        %377 = vmatprep.mubr.f32.mxu0 0.0
        %378 = vmatmul.mubr.f32.gmra.mrb[0].mxu0 %v306
        %v379 = vpop.f32.mrb[0].mxu0
        %v380 = vadd.f32 0.0, %v379
        %v381 = vpop.f32.mrb[0].mxu0
        %v382 = vadd.f32 0.0, %v381
        %383 = vdwg.mxu0
        %v385 = vsel %vm304, %v292, 0
        %v388 = vsel %vm308, %v290, 0
        %v391 = vsel %vm308, %v291, 0
        %393 = vmatprep.subr.mxu0 %v391
        %394 = vmatpush1.msra.mxu0 %v388
        %395 = vmatprep.subr.mxu0 0.0
        %396 = vmatpush1.msra.mxu0 0.0
        %397 = vmatprep.subr.mxu0 0.0
        %398 = vmatpush1.msra.mxu0 0.0
        %399 = vmatprep.subr.mxu0 0.0
        %400 = vmatpush1.msra.mxu0 0.0
        %401 = vmatprep.subr.mxu0 0.0
        %402 = vmatpush1.msra.mxu0 0.0
        %403 = vmatprep.subr.mxu0 0.0
        %404 = vmatpush1.msra.mxu0 0.0
        %405 = vmatprep.subr.mxu0 0.0
        %406 = vmatpush1.msra.mxu0 0.0
        %407 = vmatprep.subr.mxu0 0.0
        %408 = vmatpush1.msra.mxu0 0.0
        %409 = vmatprep.subr.mxu0 0.0
        %410 = vmatpush1.msra.mxu0 0.0
        %411 = vmatprep.subr.mxu0 0.0
        %412 = vmatpush1.msra.mxu0 0.0
        %413 = vmatprep.subr.mxu0 0.0
        %414 = vmatpush1.msra.mxu0 0.0
        %415 = vmatprep.subr.mxu0 0.0
        %416 = vmatpush1.msra.mxu0 0.0
        %417 = vmatprep.subr.mxu0 0.0
        %418 = vmatpush1.msra.mxu0 0.0
        %419 = vmatprep.subr.mxu0 0.0
        %420 = vmatpush1.msra.mxu0 0.0
        %421 = vmatprep.subr.mxu0 0.0
        %422 = vmatpush1.msra.mxu0 0.0
        %423 = vmatprep.subr.mxu0 0.0
        %424 = vmatpush1.msra.mxu0 0.0
        %425 = vmatprep.subr.mxu0 0.0
        %426 = vmatpush1.msra.mxu0 0.0
        %427 = vmatprep.subr.mxu0 0.0
        %428 = vmatpush1.msra.mxu0 0.0
        %429 = vmatprep.subr.mxu0 0.0
        %430 = vmatpush1.msra.mxu0 0.0
        %431 = vmatprep.subr.mxu0 0.0
        %432 = vmatpush1.msra.mxu0 0.0
        %433 = vmatprep.subr.mxu0 0.0
        %434 = vmatpush1.msra.mxu0 0.0
        %435 = vmatprep.subr.mxu0 0.0
        %436 = vmatpush1.msra.mxu0 0.0
        %437 = vmatprep.subr.mxu0 0.0
        %438 = vmatpush1.msra.mxu0 0.0
        %439 = vmatprep.subr.mxu0 0.0
        %440 = vmatpush1.msra.mxu0 0.0
        %441 = vmatprep.subr.mxu0 0.0
        %442 = vmatpush1.msra.mxu0 0.0
        %443 = vmatprep.subr.mxu0 0.0
        %444 = vmatpush1.msra.mxu0 0.0
        %445 = vmatprep.subr.mxu0 0.0
        %446 = vmatpush1.msra.mxu0 0.0
        %447 = vmatprep.subr.mxu0 0.0
        %448 = vmatpush1.msra.mxu0 0.0
        %449 = vmatprep.subr.mxu0 0.0
        %450 = vmatpush1.msra.mxu0 0.0
        %451 = vmatprep.subr.mxu0 0.0
        %452 = vmatpush1.msra.mxu0 0.0
        %453 = vmatprep.subr.mxu0 0.0
        %454 = vmatpush1.msra.mxu0 0.0
        %455 = vmatprep.subr.mxu0 0.0
        %456 = vmatpush1.msra.mxu0 0.0
        %457 = vmatprep.mubr.f32.mxu0 0.0
        %458 = vmatmul.mubr.f32.gmra.mrb[0].mxu0 %v385
        %v459 = vpop.f32.mrb[0].mxu0
        %v460 = vadd.f32 %v380, %v459
        %v461 = vpop.f32.mrb[0].mxu0
        %v462 = vadd.f32 %v382, %v461
        %463 = vdwg.mxu0
        %v464 = vld [vmem:[#allocation2] sm:$0xff]
        %v465 = vld [vmem:[#allocation2 + $0x8] sm:$0xf]
        %v466 = vsel %vm264, 1, 0
        %v467 = vsel %vm265, 1, 0
        %vm468 = vcmp.eq.s32.totalorder %v466, 1
        %vm469 = vcmp.eq.s32.totalorder %v467, 1
        %v472 = vcombine.high %v464, %v464
        %473 = vrot.lane.b32.xlu0 %v464, 15
        %v474 = vpop.permute.xlu0 %473
        %475 = vrot.lane.b32.xlu0 %v472, 15
        %v476 = vpop.permute.xlu0 %475
        %477 = vrot.lane.b32.xlu0 %v465, 15
        %v478 = vpop.permute.xlu0 %477
        %vm479 = vcmask 121856
        %v480 = vsel %vm479, %v474, %v476
        %v481 = vsel %vm479, %v476, %v478
        %v484 = vsel %vm468, %v480, 0.0
        %v485 = vsel %vm469, %v481, 0.0
        %s486 = scalar_lea.vmem %s1, 16
        %v487 = vld [vmem:[%s486] sm:$0xff]
        %v489 = vsel %vm304, %v487, 0
        %v492 = vsel %vm308, %v484, 0
        %v495 = vsel %vm308, %v485, 0
        %497 = vmatprep.subr.mxu0 %v495
        %498 = vmatpush1.msra.mxu0 %v492
        %499 = vmatprep.subr.mxu0 0.0
        %500 = vmatpush1.msra.mxu0 0.0
        %501 = vmatprep.subr.mxu0 0.0
        %502 = vmatpush1.msra.mxu0 0.0
        %503 = vmatprep.subr.mxu0 0.0
        %504 = vmatpush1.msra.mxu0 0.0
        %505 = vmatprep.subr.mxu0 0.0
        %506 = vmatpush1.msra.mxu0 0.0
        %507 = vmatprep.subr.mxu0 0.0
        %508 = vmatpush1.msra.mxu0 0.0
        %509 = vmatprep.subr.mxu0 0.0
        %510 = vmatpush1.msra.mxu0 0.0
        %511 = vmatprep.subr.mxu0 0.0
        %512 = vmatpush1.msra.mxu0 0.0
        %513 = vmatprep.subr.mxu0 0.0
        %514 = vmatpush1.msra.mxu0 0.0
        %515 = vmatprep.subr.mxu0 0.0
        %516 = vmatpush1.msra.mxu0 0.0
        %517 = vmatprep.subr.mxu0 0.0
        %518 = vmatpush1.msra.mxu0 0.0
        %519 = vmatprep.subr.mxu0 0.0
        %520 = vmatpush1.msra.mxu0 0.0
        %521 = vmatprep.subr.mxu0 0.0
        %522 = vmatpush1.msra.mxu0 0.0
        %523 = vmatprep.subr.mxu0 0.0
        %524 = vmatpush1.msra.mxu0 0.0
        %525 = vmatprep.subr.mxu0 0.0
        %526 = vmatpush1.msra.mxu0 0.0
        %527 = vmatprep.subr.mxu0 0.0
        %528 = vmatpush1.msra.mxu0 0.0
        %529 = vmatprep.subr.mxu0 0.0
        %530 = vmatpush1.msra.mxu0 0.0
        %531 = vmatprep.subr.mxu0 0.0
        %532 = vmatpush1.msra.mxu0 0.0
        %533 = vmatprep.subr.mxu0 0.0
        %534 = vmatpush1.msra.mxu0 0.0
        %535 = vmatprep.subr.mxu0 0.0
        %536 = vmatpush1.msra.mxu0 0.0
        %537 = vmatprep.subr.mxu0 0.0
        %538 = vmatpush1.msra.mxu0 0.0
        %539 = vmatprep.subr.mxu0 0.0
        %540 = vmatpush1.msra.mxu0 0.0
        %541 = vmatprep.subr.mxu0 0.0
        %542 = vmatpush1.msra.mxu0 0.0
        %543 = vmatprep.subr.mxu0 0.0
        %544 = vmatpush1.msra.mxu0 0.0
        %545 = vmatprep.subr.mxu0 0.0
        %546 = vmatpush1.msra.mxu0 0.0
        %547 = vmatprep.subr.mxu0 0.0
        %548 = vmatpush1.msra.mxu0 0.0
        %549 = vmatprep.subr.mxu0 0.0
        %550 = vmatpush1.msra.mxu0 0.0
        %551 = vmatprep.subr.mxu0 0.0
        %552 = vmatpush1.msra.mxu0 0.0
        %553 = vmatprep.subr.mxu0 0.0
        %554 = vmatpush1.msra.mxu0 0.0
        %555 = vmatprep.subr.mxu0 0.0
        %556 = vmatpush1.msra.mxu0 0.0
        %557 = vmatprep.subr.mxu0 0.0
        %558 = vmatpush1.msra.mxu0 0.0
        %559 = vmatprep.subr.mxu0 0.0
        %560 = vmatpush1.msra.mxu0 0.0
        %561 = vmatprep.mubr.f32.mxu0 0.0
        %562 = vmatmul.mubr.f32.gmra.mrb[0].mxu0 %v489
        %v563 = vpop.f32.mrb[0].mxu0
        %v564 = vadd.f32 0.0, %v563
        %v565 = vpop.f32.mrb[0].mxu0
        %v566 = vadd.f32 0.0, %v565
        %567 = vdwg.mxu0
        %v568 = vadd.f32 %v460, %v564
        %v569 = vadd.f32 %v462, %v566
        %v570 = vld [vmem:[#allocation2] sm:$0xff]
        %v571 = vld [vmem:[#allocation2 + $0x8] sm:$0xf]
        %v574 = vcombine.high %v570, %v570
        %575 = vrot.lane.b32.xlu0 %v570, 1
        %v576 = vpop.permute.xlu0 %575
        %577 = vrot.lane.b32.xlu0 %v574, 1
        %v578 = vpop.permute.xlu0 %577
        %579 = vrot.lane.b32.xlu0 %v571, 1
        %v580 = vpop.permute.xlu0 %579
        %vm581 = vcmask 7168
        %v582 = vsel %vm581, %v576, %v578
        %v583 = vsel %vm581, %v578, %v580
        %v586 = vsel %vm274, %v582, 0.0
        %v587 = vsel %vm275, %v583, 0.0
        %s588 = scalar_lea.vmem %s1, 24
        %v589 = vld [vmem:[%s588] sm:$0xff]
        %v591 = vsel %vm304, %v589, 0
        %v594 = vsel %vm308, %v586, 0
        %v597 = vsel %vm308, %v587, 0
        %599 = vmatprep.subr.mxu0 %v597
        %600 = vmatpush1.msra.mxu0 %v594
        %601 = vmatprep.subr.mxu0 0.0
        %602 = vmatpush1.msra.mxu0 0.0
        %603 = vmatprep.subr.mxu0 0.0
        %604 = vmatpush1.msra.mxu0 0.0
        %605 = vmatprep.subr.mxu0 0.0
        %606 = vmatpush1.msra.mxu0 0.0
        %607 = vmatprep.subr.mxu0 0.0
        %608 = vmatpush1.msra.mxu0 0.0
        %609 = vmatprep.subr.mxu0 0.0
        %610 = vmatpush1.msra.mxu0 0.0
        %611 = vmatprep.subr.mxu0 0.0
        %612 = vmatpush1.msra.mxu0 0.0
        %613 = vmatprep.subr.mxu0 0.0
        %614 = vmatpush1.msra.mxu0 0.0
        %615 = vmatprep.subr.mxu0 0.0
        %616 = vmatpush1.msra.mxu0 0.0
        %617 = vmatprep.subr.mxu0 0.0
        %618 = vmatpush1.msra.mxu0 0.0
        %619 = vmatprep.subr.mxu0 0.0
        %620 = vmatpush1.msra.mxu0 0.0
        %621 = vmatprep.subr.mxu0 0.0
        %622 = vmatpush1.msra.mxu0 0.0
        %623 = vmatprep.subr.mxu0 0.0
        %624 = vmatpush1.msra.mxu0 0.0
        %625 = vmatprep.subr.mxu0 0.0
        %626 = vmatpush1.msra.mxu0 0.0
        %627 = vmatprep.subr.mxu0 0.0
        %628 = vmatpush1.msra.mxu0 0.0
        %629 = vmatprep.subr.mxu0 0.0
        %630 = vmatpush1.msra.mxu0 0.0
        %631 = vmatprep.subr.mxu0 0.0
        %632 = vmatpush1.msra.mxu0 0.0
        %633 = vmatprep.subr.mxu0 0.0
        %634 = vmatpush1.msra.mxu0 0.0
        %635 = vmatprep.subr.mxu0 0.0
        %636 = vmatpush1.msra.mxu0 0.0
        %637 = vmatprep.subr.mxu0 0.0
        %638 = vmatpush1.msra.mxu0 0.0
        %639 = vmatprep.subr.mxu0 0.0
        %640 = vmatpush1.msra.mxu0 0.0
        %641 = vmatprep.subr.mxu0 0.0
        %642 = vmatpush1.msra.mxu0 0.0
        %643 = vmatprep.subr.mxu0 0.0
        %644 = vmatpush1.msra.mxu0 0.0
        %645 = vmatprep.subr.mxu0 0.0
        %646 = vmatpush1.msra.mxu0 0.0
        %647 = vmatprep.subr.mxu0 0.0
        %648 = vmatpush1.msra.mxu0 0.0
        %649 = vmatprep.subr.mxu0 0.0
        %650 = vmatpush1.msra.mxu0 0.0
        %651 = vmatprep.subr.mxu0 0.0
        %652 = vmatpush1.msra.mxu0 0.0
        %653 = vmatprep.subr.mxu0 0.0
        %654 = vmatpush1.msra.mxu0 0.0
        %655 = vmatprep.subr.mxu0 0.0
        %656 = vmatpush1.msra.mxu0 0.0
        %657 = vmatprep.subr.mxu0 0.0
        %658 = vmatpush1.msra.mxu0 0.0
        %659 = vmatprep.subr.mxu0 0.0
        %660 = vmatpush1.msra.mxu0 0.0
        %661 = vmatprep.subr.mxu0 0.0
        %662 = vmatpush1.msra.mxu0 0.0
        %663 = vmatprep.mubr.f32.mxu0 0.0
        %664 = vmatmul.mubr.f32.gmra.mrb[0].mxu0 %v591
        %v665 = vpop.f32.mrb[0].mxu0
        %v666 = vadd.f32 0.0, %v665
        %v667 = vpop.f32.mrb[0].mxu0
        %v668 = vadd.f32 0.0, %v667
        %669 = vdwg.mxu0
        %v670 = vadd.f32 %v568, %v666
        %v671 = vadd.f32 %v569, %v668
        %v672 = vld [vmem:[#allocation2 + $0x4] sm:$0xff]
        %s673 = scalar_lea.vmem %s1, 32
        %v674 = vld [vmem:[%s673] sm:$0xff]
        %v676 = vcombine.high %v672, %v672
        %v678 = vsel %vm304, %v674, 0
        %v680 = vsel %vm308, %v672, 0
        %v682 = vsel %vm308, %v676, 0
        %684 = vmatprep.subr.mxu0 %v682
        %685 = vmatpush1.msra.mxu0 %v680
        %686 = vmatprep.subr.mxu0 0.0
        %687 = vmatpush1.msra.mxu0 0.0
        %688 = vmatprep.subr.mxu0 0.0
        %689 = vmatpush1.msra.mxu0 0.0
        %690 = vmatprep.subr.mxu0 0.0
        %691 = vmatpush1.msra.mxu0 0.0
        %692 = vmatprep.subr.mxu0 0.0
        %693 = vmatpush1.msra.mxu0 0.0
        %694 = vmatprep.subr.mxu0 0.0
        %695 = vmatpush1.msra.mxu0 0.0
        %696 = vmatprep.subr.mxu0 0.0
        %697 = vmatpush1.msra.mxu0 0.0
        %698 = vmatprep.subr.mxu0 0.0
        %699 = vmatpush1.msra.mxu0 0.0
        %700 = vmatprep.subr.mxu0 0.0
        %701 = vmatpush1.msra.mxu0 0.0
        %702 = vmatprep.subr.mxu0 0.0
        %703 = vmatpush1.msra.mxu0 0.0
        %704 = vmatprep.subr.mxu0 0.0
        %705 = vmatpush1.msra.mxu0 0.0
        %706 = vmatprep.subr.mxu0 0.0
        %707 = vmatpush1.msra.mxu0 0.0
        %708 = vmatprep.subr.mxu0 0.0
        %709 = vmatpush1.msra.mxu0 0.0
        %710 = vmatprep.subr.mxu0 0.0
        %711 = vmatpush1.msra.mxu0 0.0
        %712 = vmatprep.subr.mxu0 0.0
        %713 = vmatpush1.msra.mxu0 0.0
        %714 = vmatprep.subr.mxu0 0.0
        %715 = vmatpush1.msra.mxu0 0.0
        %716 = vmatprep.subr.mxu0 0.0
        %717 = vmatpush1.msra.mxu0 0.0
        %718 = vmatprep.subr.mxu0 0.0
        %719 = vmatpush1.msra.mxu0 0.0
        %720 = vmatprep.subr.mxu0 0.0
        %721 = vmatpush1.msra.mxu0 0.0
        %722 = vmatprep.subr.mxu0 0.0
        %723 = vmatpush1.msra.mxu0 0.0
        %724 = vmatprep.subr.mxu0 0.0
        %725 = vmatpush1.msra.mxu0 0.0
        %726 = vmatprep.subr.mxu0 0.0
        %727 = vmatpush1.msra.mxu0 0.0
        %728 = vmatprep.subr.mxu0 0.0
        %729 = vmatpush1.msra.mxu0 0.0
        %730 = vmatprep.subr.mxu0 0.0
        %731 = vmatpush1.msra.mxu0 0.0
        %732 = vmatprep.subr.mxu0 0.0
        %733 = vmatpush1.msra.mxu0 0.0
        %734 = vmatprep.subr.mxu0 0.0
        %735 = vmatpush1.msra.mxu0 0.0
        %736 = vmatprep.subr.mxu0 0.0
        %737 = vmatpush1.msra.mxu0 0.0
        %738 = vmatprep.subr.mxu0 0.0
        %739 = vmatpush1.msra.mxu0 0.0
        %740 = vmatprep.subr.mxu0 0.0
        %741 = vmatpush1.msra.mxu0 0.0
        %742 = vmatprep.subr.mxu0 0.0
        %743 = vmatpush1.msra.mxu0 0.0
        %744 = vmatprep.subr.mxu0 0.0
        %745 = vmatpush1.msra.mxu0 0.0
        %746 = vmatprep.subr.mxu0 0.0
        %747 = vmatpush1.msra.mxu0 0.0
        %748 = vmatprep.mubr.f32.mxu0 0.0
        %749 = vmatmul.mubr.f32.gmra.mrb[0].mxu0 %v678
        %v750 = vpop.f32.mrb[0].mxu0
        %v751 = vadd.f32 0.0, %v750
        %v752 = vpop.f32.mrb[0].mxu0
        %v753 = vadd.f32 0.0, %v752
        %754 = vdwg.mxu0
        %v755 = vadd.f32 %v670, %v751
        %v756 = vadd.f32 %v671, %v753
        %v757 = vld [vmem:[#allocation2 + $0x4] sm:$0xff]
        %v758 = vld [vmem:[#allocation2 + $0xc] sm:$0xf]
        %v761 = vcombine.high %v757, %v757
        %762 = vrot.lane.b32.xlu0 %v757, 127
        %v763 = vpop.permute.xlu0 %762
        %764 = vrot.lane.b32.xlu0 %v761, 127
        %v765 = vpop.permute.xlu0 %764
        %766 = vrot.lane.b32.xlu0 %v758, 127
        %v767 = vpop.permute.xlu0 %766
        %vm768 = vcmask 1039360
        %v769 = vsel %vm768, %v763, %v765
        %v770 = vsel %vm768, %v765, %v767
        %v773 = vsel %vm468, %v769, 0.0
        %v774 = vsel %vm469, %v770, 0.0
        %s775 = scalar_lea.vmem %s1, 40
        %v776 = vld [vmem:[%s775] sm:$0xff]
        %v778 = vsel %vm304, %v776, 0
        %v781 = vsel %vm308, %v773, 0
        %v784 = vsel %vm308, %v774, 0
        %786 = vmatprep.subr.mxu0 %v784
        %787 = vmatpush1.msra.mxu0 %v781
        %788 = vmatprep.subr.mxu0 0.0
        %789 = vmatpush1.msra.mxu0 0.0
        %790 = vmatprep.subr.mxu0 0.0
        %791 = vmatpush1.msra.mxu0 0.0
        %792 = vmatprep.subr.mxu0 0.0
        %793 = vmatpush1.msra.mxu0 0.0
        %794 = vmatprep.subr.mxu0 0.0
        %795 = vmatpush1.msra.mxu0 0.0
        %796 = vmatprep.subr.mxu0 0.0
        %797 = vmatpush1.msra.mxu0 0.0
        %798 = vmatprep.subr.mxu0 0.0
        %799 = vmatpush1.msra.mxu0 0.0
        %800 = vmatprep.subr.mxu0 0.0
        %801 = vmatpush1.msra.mxu0 0.0
        %802 = vmatprep.subr.mxu0 0.0
        %803 = vmatpush1.msra.mxu0 0.0
        %804 = vmatprep.subr.mxu0 0.0
        %805 = vmatpush1.msra.mxu0 0.0
        %806 = vmatprep.subr.mxu0 0.0
        %807 = vmatpush1.msra.mxu0 0.0
        %808 = vmatprep.subr.mxu0 0.0
        %809 = vmatpush1.msra.mxu0 0.0
        %810 = vmatprep.subr.mxu0 0.0
        %811 = vmatpush1.msra.mxu0 0.0
        %812 = vmatprep.subr.mxu0 0.0
        %813 = vmatpush1.msra.mxu0 0.0
        %814 = vmatprep.subr.mxu0 0.0
        %815 = vmatpush1.msra.mxu0 0.0
        %816 = vmatprep.subr.mxu0 0.0
        %817 = vmatpush1.msra.mxu0 0.0
        %818 = vmatprep.subr.mxu0 0.0
        %819 = vmatpush1.msra.mxu0 0.0
        %820 = vmatprep.subr.mxu0 0.0
        %821 = vmatpush1.msra.mxu0 0.0
        %822 = vmatprep.subr.mxu0 0.0
        %823 = vmatpush1.msra.mxu0 0.0
        %824 = vmatprep.subr.mxu0 0.0
        %825 = vmatpush1.msra.mxu0 0.0
        %826 = vmatprep.subr.mxu0 0.0
        %827 = vmatpush1.msra.mxu0 0.0
        %828 = vmatprep.subr.mxu0 0.0
        %829 = vmatpush1.msra.mxu0 0.0
        %830 = vmatprep.subr.mxu0 0.0
        %831 = vmatpush1.msra.mxu0 0.0
        %832 = vmatprep.subr.mxu0 0.0
        %833 = vmatpush1.msra.mxu0 0.0
        %834 = vmatprep.subr.mxu0 0.0
        %835 = vmatpush1.msra.mxu0 0.0
        %836 = vmatprep.subr.mxu0 0.0
        %837 = vmatpush1.msra.mxu0 0.0
        %838 = vmatprep.subr.mxu0 0.0
        %839 = vmatpush1.msra.mxu0 0.0
        %840 = vmatprep.subr.mxu0 0.0
        %841 = vmatpush1.msra.mxu0 0.0
        %842 = vmatprep.subr.mxu0 0.0
        %843 = vmatpush1.msra.mxu0 0.0
        %844 = vmatprep.subr.mxu0 0.0
        %845 = vmatpush1.msra.mxu0 0.0
        %846 = vmatprep.subr.mxu0 0.0
        %847 = vmatpush1.msra.mxu0 0.0
        %848 = vmatprep.subr.mxu0 0.0
        %849 = vmatpush1.msra.mxu0 0.0
        %850 = vmatprep.mubr.f32.mxu0 0.0
        %851 = vmatmul.mubr.f32.gmra.mrb[0].mxu0 %v778
        %v852 = vpop.f32.mrb[0].mxu0
        %v853 = vadd.f32 0.0, %v852
        %v854 = vpop.f32.mrb[0].mxu0
        %v855 = vadd.f32 0.0, %v854
        %856 = vdwg.mxu0
        %v857 = vadd.f32 %v755, %v853
        %v858 = vadd.f32 %v756, %v855
        %v859 = vld [vmem:[#allocation2 + $0x4] sm:$0xff]
        %v860 = vld [vmem:[#allocation2 + $0xc] sm:$0xf]
        %v863 = vcombine.high %v859, %v859
        %864 = vrot.lane.b32.xlu0 %v859, 113
        %v865 = vpop.permute.xlu0 %864
        %866 = vrot.lane.b32.xlu0 %v863, 113
        %v867 = vpop.permute.xlu0 %866
        %868 = vrot.lane.b32.xlu0 %v860, 113
        %v869 = vpop.permute.xlu0 %868
        %vm870 = vcmask 924672
        %v871 = vsel %vm870, %v865, %v867
        %v872 = vsel %vm870, %v867, %v869
        %v875 = vsel %vm274, %v871, 0.0
        %v876 = vsel %vm275, %v872, 0.0
        %s877 = scalar_lea.vmem %s1, 48
        %v878 = vld [vmem:[%s877] sm:$0xff]
        %v880 = vsel %vm304, %v878, 0
        %v883 = vsel %vm308, %v875, 0
        %v886 = vsel %vm308, %v876, 0
        %888 = vmatprep.subr.mxu0 %v886
        %889 = vmatpush1.msra.mxu0 %v883
        %890 = vmatprep.subr.mxu0 0.0
        %891 = vmatpush1.msra.mxu0 0.0
        %892 = vmatprep.subr.mxu0 0.0
        %893 = vmatpush1.msra.mxu0 0.0
        %894 = vmatprep.subr.mxu0 0.0
        %895 = vmatpush1.msra.mxu0 0.0
        %896 = vmatprep.subr.mxu0 0.0
        %897 = vmatpush1.msra.mxu0 0.0
        %898 = vmatprep.subr.mxu0 0.0
        %899 = vmatpush1.msra.mxu0 0.0
        %900 = vmatprep.subr.mxu0 0.0
        %901 = vmatpush1.msra.mxu0 0.0
        %902 = vmatprep.subr.mxu0 0.0
        %903 = vmatpush1.msra.mxu0 0.0
        %904 = vmatprep.subr.mxu0 0.0
        %905 = vmatpush1.msra.mxu0 0.0
        %906 = vmatprep.subr.mxu0 0.0
        %907 = vmatpush1.msra.mxu0 0.0
        %908 = vmatprep.subr.mxu0 0.0
        %909 = vmatpush1.msra.mxu0 0.0
        %910 = vmatprep.subr.mxu0 0.0
        %911 = vmatpush1.msra.mxu0 0.0
        %912 = vmatprep.subr.mxu0 0.0
        %913 = vmatpush1.msra.mxu0 0.0
        %914 = vmatprep.subr.mxu0 0.0
        %915 = vmatpush1.msra.mxu0 0.0
        %916 = vmatprep.subr.mxu0 0.0
        %917 = vmatpush1.msra.mxu0 0.0
        %918 = vmatprep.subr.mxu0 0.0
        %919 = vmatpush1.msra.mxu0 0.0
        %920 = vmatprep.subr.mxu0 0.0
        %921 = vmatpush1.msra.mxu0 0.0
        %922 = vmatprep.subr.mxu0 0.0
        %923 = vmatpush1.msra.mxu0 0.0
        %924 = vmatprep.subr.mxu0 0.0
        %925 = vmatpush1.msra.mxu0 0.0
        %926 = vmatprep.subr.mxu0 0.0
        %927 = vmatpush1.msra.mxu0 0.0
        %928 = vmatprep.subr.mxu0 0.0
        %929 = vmatpush1.msra.mxu0 0.0
        %930 = vmatprep.subr.mxu0 0.0
        %931 = vmatpush1.msra.mxu0 0.0
        %932 = vmatprep.subr.mxu0 0.0
        %933 = vmatpush1.msra.mxu0 0.0
        %934 = vmatprep.subr.mxu0 0.0
        %935 = vmatpush1.msra.mxu0 0.0
        %936 = vmatprep.subr.mxu0 0.0
        %937 = vmatpush1.msra.mxu0 0.0
        %938 = vmatprep.subr.mxu0 0.0
        %939 = vmatpush1.msra.mxu0 0.0
        %940 = vmatprep.subr.mxu0 0.0
        %941 = vmatpush1.msra.mxu0 0.0
        %942 = vmatprep.subr.mxu0 0.0
        %943 = vmatpush1.msra.mxu0 0.0
        %944 = vmatprep.subr.mxu0 0.0
        %945 = vmatpush1.msra.mxu0 0.0
        %946 = vmatprep.subr.mxu0 0.0
        %947 = vmatpush1.msra.mxu0 0.0
        %948 = vmatprep.subr.mxu0 0.0
        %949 = vmatpush1.msra.mxu0 0.0
        %950 = vmatprep.subr.mxu0 0.0
        %951 = vmatpush1.msra.mxu0 0.0
        %952 = vmatprep.mubr.f32.mxu0 0.0
        %953 = vmatmul.mubr.f32.gmra.mrb[0].mxu0 %v880
        %v954 = vpop.f32.mrb[0].mxu0
        %v955 = vadd.f32 0.0, %v954
        %v956 = vpop.f32.mrb[0].mxu0
        %v957 = vadd.f32 0.0, %v956
        %958 = vdwg.mxu0
        %v959 = vadd.f32 %v857, %v955
        %v960 = vadd.f32 %v858, %v957
        %v961 = vld [vmem:[#allocation2 + $0x4] sm:$0xff]
        %v962 = vld [vmem:[#allocation2 + $0xc] sm:$0xf]
        %s963 = scalar_lea.vmem %s1, 56
        %v964 = vld [vmem:[%s963] sm:$0xff]
        %v967 = vcombine.high %v961, %v961
        %968 = vrot.lane.b32.xlu0 %v961, 112
        %v969 = vpop.permute.xlu0 %968
        %970 = vrot.lane.b32.xlu0 %v967, 112
        %v971 = vpop.permute.xlu0 %970
        %972 = vrot.lane.b32.xlu0 %v962, 112
        %v973 = vpop.permute.xlu0 %972
        %vm974 = vcmask 916480
        %v975 = vsel %vm974, %v969, %v971
        %v976 = vsel %vm974, %v971, %v973
        %v978 = vsel %vm304, %v964, 0
        %v980 = vsel %vm308, %v975, 0
        %v982 = vsel %vm308, %v976, 0
        %984 = vmatprep.subr.mxu0 %v982
        %985 = vmatpush1.msra.mxu0 %v980
        %986 = vmatprep.subr.mxu0 0.0
        %987 = vmatpush1.msra.mxu0 0.0
        %988 = vmatprep.subr.mxu0 0.0
        %989 = vmatpush1.msra.mxu0 0.0
        %990 = vmatprep.subr.mxu0 0.0
        %991 = vmatpush1.msra.mxu0 0.0
        %992 = vmatprep.subr.mxu0 0.0
        %993 = vmatpush1.msra.mxu0 0.0
        %994 = vmatprep.subr.mxu0 0.0
        %995 = vmatpush1.msra.mxu0 0.0
        %996 = vmatprep.subr.mxu0 0.0
        %997 = vmatpush1.msra.mxu0 0.0
        %998 = vmatprep.subr.mxu0 0.0
        %999 = vmatpush1.msra.mxu0 0.0
        %1000 = vmatprep.subr.mxu0 0.0
        %1001 = vmatpush1.msra.mxu0 0.0
        %1002 = vmatprep.subr.mxu0 0.0
        %1003 = vmatpush1.msra.mxu0 0.0
        %1004 = vmatprep.subr.mxu0 0.0
        %1005 = vmatpush1.msra.mxu0 0.0
        %1006 = vmatprep.subr.mxu0 0.0
        %1007 = vmatpush1.msra.mxu0 0.0
        %1008 = vmatprep.subr.mxu0 0.0
        %1009 = vmatpush1.msra.mxu0 0.0
        %1010 = vmatprep.subr.mxu0 0.0
        %1011 = vmatpush1.msra.mxu0 0.0
        %1012 = vmatprep.subr.mxu0 0.0
        %1013 = vmatpush1.msra.mxu0 0.0
        %1014 = vmatprep.subr.mxu0 0.0
        %1015 = vmatpush1.msra.mxu0 0.0
        %1016 = vmatprep.subr.mxu0 0.0
        %1017 = vmatpush1.msra.mxu0 0.0
        %1018 = vmatprep.subr.mxu0 0.0
        %1019 = vmatpush1.msra.mxu0 0.0
        %1020 = vmatprep.subr.mxu0 0.0
        %1021 = vmatpush1.msra.mxu0 0.0
        %1022 = vmatprep.subr.mxu0 0.0
        %1023 = vmatpush1.msra.mxu0 0.0
        %1024 = vmatprep.subr.mxu0 0.0
        %1025 = vmatpush1.msra.mxu0 0.0
        %1026 = vmatprep.subr.mxu0 0.0
        %1027 = vmatpush1.msra.mxu0 0.0
        %1028 = vmatprep.subr.mxu0 0.0
        %1029 = vmatpush1.msra.mxu0 0.0
        %1030 = vmatprep.subr.mxu0 0.0
        %1031 = vmatpush1.msra.mxu0 0.0
        %1032 = vmatprep.subr.mxu0 0.0
        %1033 = vmatpush1.msra.mxu0 0.0
        %1034 = vmatprep.subr.mxu0 0.0
        %1035 = vmatpush1.msra.mxu0 0.0
        %1036 = vmatprep.subr.mxu0 0.0
        %1037 = vmatpush1.msra.mxu0 0.0
        %1038 = vmatprep.subr.mxu0 0.0
        %1039 = vmatpush1.msra.mxu0 0.0
        %1040 = vmatprep.subr.mxu0 0.0
        %1041 = vmatpush1.msra.mxu0 0.0
        %1042 = vmatprep.subr.mxu0 0.0
        %1043 = vmatpush1.msra.mxu0 0.0
        %1044 = vmatprep.subr.mxu0 0.0
        %1045 = vmatpush1.msra.mxu0 0.0
        %1046 = vmatprep.subr.mxu0 0.0
        %1047 = vmatpush1.msra.mxu0 0.0
        %1048 = vmatprep.mubr.f32.mxu0 0.0
        %1049 = vmatmul.mubr.f32.gmra.mrb[0].mxu0 %v978
        %v1050 = vpop.f32.mrb[0].mxu0
        %v1051 = vadd.f32 0.0, %v1050
        %v1052 = vpop.f32.mrb[0].mxu0
        %v1053 = vadd.f32 0.0, %v1052
        %1054 = vdwg.mxu0
        %v1055 = vadd.f32 %v959, %v1051
        %v1056 = vadd.f32 %v960, %v1053
        %v1057 = vld [vmem:[#allocation2 + $0x4] sm:$0xff]
        %v1058 = vld [vmem:[#allocation2 + $0xc] sm:$0xf]
        %v1061 = vcombine.high %v1057, %v1057
        %1062 = vrot.lane.b32.xlu0 %v1057, 111
        %v1063 = vpop.permute.xlu0 %1062
        %1064 = vrot.lane.b32.xlu0 %v1061, 111
        %v1065 = vpop.permute.xlu0 %1064
        %1066 = vrot.lane.b32.xlu0 %v1058, 111
        %v1067 = vpop.permute.xlu0 %1066
        %vm1068 = vcmask 908288
        %v1069 = vsel %vm1068, %v1063, %v1065
        %v1070 = vsel %vm1068, %v1065, %v1067
        %v1073 = vsel %vm468, %v1069, 0.0
        %v1074 = vsel %vm469, %v1070, 0.0
        %s1075 = scalar_lea.vmem %s1, 64
        %v1076 = vld [vmem:[%s1075] sm:$0xff]
        %v1078 = vsel %vm304, %v1076, 0
        %v1081 = vsel %vm308, %v1073, 0
        %v1084 = vsel %vm308, %v1074, 0
        %1086 = vmatprep.subr.mxu0 %v1084
        %1087 = vmatpush1.msra.mxu0 %v1081
        %1088 = vmatprep.subr.mxu0 0.0
        %1089 = vmatpush1.msra.mxu0 0.0
        %1090 = vmatprep.subr.mxu0 0.0
        %1091 = vmatpush1.msra.mxu0 0.0
        %1092 = vmatprep.subr.mxu0 0.0
        %1093 = vmatpush1.msra.mxu0 0.0
        %1094 = vmatprep.subr.mxu0 0.0
        %1095 = vmatpush1.msra.mxu0 0.0
        %1096 = vmatprep.subr.mxu0 0.0
        %1097 = vmatpush1.msra.mxu0 0.0
        %1098 = vmatprep.subr.mxu0 0.0
        %1099 = vmatpush1.msra.mxu0 0.0
        %1100 = vmatprep.subr.mxu0 0.0
        %1101 = vmatpush1.msra.mxu0 0.0
        %1102 = vmatprep.subr.mxu0 0.0
        %1103 = vmatpush1.msra.mxu0 0.0
        %1104 = vmatprep.subr.mxu0 0.0
        %1105 = vmatpush1.msra.mxu0 0.0
        %1106 = vmatprep.subr.mxu0 0.0
        %1107 = vmatpush1.msra.mxu0 0.0
        %1108 = vmatprep.subr.mxu0 0.0
        %1109 = vmatpush1.msra.mxu0 0.0
        %1110 = vmatprep.subr.mxu0 0.0
        %1111 = vmatpush1.msra.mxu0 0.0
        %1112 = vmatprep.subr.mxu0 0.0
        %1113 = vmatpush1.msra.mxu0 0.0
        %1114 = vmatprep.subr.mxu0 0.0
        %1115 = vmatpush1.msra.mxu0 0.0
        %1116 = vmatprep.subr.mxu0 0.0
        %1117 = vmatpush1.msra.mxu0 0.0
        %1118 = vmatprep.subr.mxu0 0.0
        %1119 = vmatpush1.msra.mxu0 0.0
        %1120 = vmatprep.subr.mxu0 0.0
        %1121 = vmatpush1.msra.mxu0 0.0
        %1122 = vmatprep.subr.mxu0 0.0
        %1123 = vmatpush1.msra.mxu0 0.0
        %1124 = vmatprep.subr.mxu0 0.0
        %1125 = vmatpush1.msra.mxu0 0.0
        %1126 = vmatprep.subr.mxu0 0.0
        %1127 = vmatpush1.msra.mxu0 0.0
        %1128 = vmatprep.subr.mxu0 0.0
        %1129 = vmatpush1.msra.mxu0 0.0
        %1130 = vmatprep.subr.mxu0 0.0
        %1131 = vmatpush1.msra.mxu0 0.0
        %1132 = vmatprep.subr.mxu0 0.0
        %1133 = vmatpush1.msra.mxu0 0.0
        %1134 = vmatprep.subr.mxu0 0.0
        %1135 = vmatpush1.msra.mxu0 0.0
        %1136 = vmatprep.subr.mxu0 0.0
        %1137 = vmatpush1.msra.mxu0 0.0
        %1138 = vmatprep.subr.mxu0 0.0
        %1139 = vmatpush1.msra.mxu0 0.0
        %1140 = vmatprep.subr.mxu0 0.0
        %1141 = vmatpush1.msra.mxu0 0.0
        %1142 = vmatprep.subr.mxu0 0.0
        %1143 = vmatpush1.msra.mxu0 0.0
        %1144 = vmatprep.subr.mxu0 0.0
        %1145 = vmatpush1.msra.mxu0 0.0
        %1146 = vmatprep.subr.mxu0 0.0
        %1147 = vmatpush1.msra.mxu0 0.0
        %1148 = vmatprep.subr.mxu0 0.0
        %1149 = vmatpush1.msra.mxu0 0.0
        %1150 = vmatprep.mubr.f32.mxu0 0.0
        %1151 = vmatmul.mubr.f32.gmra.mrb[0].mxu0 %v1078
        %v1152 = vpop.f32.mrb[0].mxu0
        %v1153 = vadd.f32 0.0, %v1152
        %v1154 = vpop.f32.mrb[0].mxu0
        %v1155 = vadd.f32 0.0, %v1154
        %1156 = vdwg.mxu0
        %v1157 = vadd.f32 %v1055, %v1153
        %v1158 = vadd.f32 %v1056, %v1155
        %v1159 = vld [vmem:[%s2] sm:$0xff]
        %1161 = vset.pattern.permute.xlu0 0
        %1162 = vperm.xlu0 %1161, %v1159
        %v1163 = vpop.permute.xlu0 %1162
        %v1165 = vadd.f32 %v1157, %v1163
        %v1166 = vadd.f32 %v1158, %v1163
        %v1167 = vmax.f32 %v1165, 0.0
        %v1168 = vmax.f32 %v1166, 0.0
        %1169 = vst [vmem:[#allocation3] sm:$0xff] 0.0
        %1170 = vst [vmem:[#allocation3 + $0x8] sm:$0xff] 0.0
        %1171 = vst [vmem:[#allocation3 + $0x10] sm:$0xff] 0.0
        %1172 = vst [vmem:[#allocation3 + $0x18] sm:$0xff] 0.0
        %1173 = vst [vmem:[#allocation3 + $0x8] sm:$0xff] %v1167
        %1174 = vst [vmem:[#allocation3 + $0x10] sm:$0xff] %v1168
        %v1175 = vld [vmem:[#allocation3] sm:$0xff]
        %v1176 = vld [vmem:[#allocation3 + $0x8] sm:$0xff]
        %v1177 = vld [vmem:[#allocation3 + $0x10] sm:$0xff]
        %1181 = vrot.lane.b32.xlu0 %v1175, 17
        %v1182 = vpop.permute.xlu0 %1181
        %1183 = vrot.lane.b32.xlu0 %v1176, 17
        %v1184 = vpop.permute.xlu0 %1183
        %1185 = vrot.lane.b32.xlu0 %v1177, 17
        %v1186 = vpop.permute.xlu0 %1185
        %v1187 = vsel %vm285, %v1182, %v1184
        %v1188 = vsel %vm285, %v1184, %v1186
        %v1191 = vsel %vm274, %v1187, 0.0
        %v1192 = vsel %vm275, %v1188, 0.0
        %v1193 = vld [vmem:[%s3] sm:$0xff]
        %s1194 = scalar_lea.vmem %s3, 8
        %v1195 = vld [vmem:[%s1194] sm:$0xff]
        %1196 = vrot.lane.b32.xlu0 %v1175, 16
        %v1197 = vpop.permute.xlu0 %1196
        %1198 = vrot.lane.b32.xlu0 %v1176, 16
        %v1199 = vpop.permute.xlu0 %1198
        %1200 = vrot.lane.b32.xlu0 %v1177, 16
        %v1201 = vpop.permute.xlu0 %1200
        %v1202 = vsel %vm301, %v1197, %v1199
        %v1203 = vsel %vm301, %v1199, %v1201
        %vm1206 = vcmask 64512
        %v1208 = vsel %vm1206, %v1195, 0
        %1210 = vmatprep.subr.mxu0 %v1203
        %1211 = vmatpush1.msra.mxu0 %v1202
        %1212 = vmatprep.subr.mxu0 0.0
        %1213 = vmatpush1.msra.mxu0 0.0
        %1214 = vmatprep.subr.mxu0 0.0
        %1215 = vmatpush1.msra.mxu0 0.0
        %1216 = vmatprep.subr.mxu0 0.0
        %1217 = vmatpush1.msra.mxu0 0.0
        %1218 = vmatprep.subr.mxu0 0.0
        %1219 = vmatpush1.msra.mxu0 0.0
        %1220 = vmatprep.subr.mxu0 0.0
        %1221 = vmatpush1.msra.mxu0 0.0
        %1222 = vmatprep.subr.mxu0 0.0
        %1223 = vmatpush1.msra.mxu0 0.0
        %1224 = vmatprep.subr.mxu0 0.0
        %1225 = vmatpush1.msra.mxu0 0.0
        %1226 = vmatprep.subr.mxu0 0.0
        %1227 = vmatpush1.msra.mxu0 0.0
        %1228 = vmatprep.subr.mxu0 0.0
        %1229 = vmatpush1.msra.mxu0 0.0
        %1230 = vmatprep.subr.mxu0 0.0
        %1231 = vmatpush1.msra.mxu0 0.0
        %1232 = vmatprep.subr.mxu0 0.0
        %1233 = vmatpush1.msra.mxu0 0.0
        %1234 = vmatprep.subr.mxu0 0.0
        %1235 = vmatpush1.msra.mxu0 0.0
        %1236 = vmatprep.subr.mxu0 0.0
        %1237 = vmatpush1.msra.mxu0 0.0
        %1238 = vmatprep.subr.mxu0 0.0
        %1239 = vmatpush1.msra.mxu0 0.0
        %1240 = vmatprep.subr.mxu0 0.0
        %1241 = vmatpush1.msra.mxu0 0.0
        %1242 = vmatprep.subr.mxu0 0.0
        %1243 = vmatpush1.msra.mxu0 0.0
        %1244 = vmatprep.subr.mxu0 0.0
        %1245 = vmatpush1.msra.mxu0 0.0
        %1246 = vmatprep.subr.mxu0 0.0
        %1247 = vmatpush1.msra.mxu0 0.0
        %1248 = vmatprep.subr.mxu0 0.0
        %1249 = vmatpush1.msra.mxu0 0.0
        %1250 = vmatprep.subr.mxu0 0.0
        %1251 = vmatpush1.msra.mxu0 0.0
        %1252 = vmatprep.subr.mxu0 0.0
        %1253 = vmatpush1.msra.mxu0 0.0
        %1254 = vmatprep.subr.mxu0 0.0
        %1255 = vmatpush1.msra.mxu0 0.0
        %1256 = vmatprep.subr.mxu0 0.0
        %1257 = vmatpush1.msra.mxu0 0.0
        %1258 = vmatprep.subr.mxu0 0.0
        %1259 = vmatpush1.msra.mxu0 0.0
        %1260 = vmatprep.subr.mxu0 0.0
        %1261 = vmatpush1.msra.mxu0 0.0
        %1262 = vmatprep.subr.mxu0 0.0
        %1263 = vmatpush1.msra.mxu0 0.0
        %1264 = vmatprep.subr.mxu0 0.0
        %1265 = vmatpush1.msra.mxu0 0.0
        %1266 = vmatprep.subr.mxu0 0.0
        %1267 = vmatpush1.msra.mxu0 0.0
        %1268 = vmatprep.subr.mxu0 0.0
        %1269 = vmatpush1.msra.mxu0 0.0
        %1270 = vmatprep.subr.mxu0 0.0
        %1271 = vmatpush1.msra.mxu0 0.0
        %1272 = vmatprep.subr.mxu0 0.0
        %1273 = vmatpush1.msra.mxu0 0.0
        %1274 = vmatprep.mubr.f32.mxu0 0.0
        %1275 = vmatmul.mubr.f32.gmra.mrb[0].mxu0 %v1208
        %v1276 = vpop.f32.mrb[0].mxu0
        %v1277 = vadd.f32 0.0, %v1276
        %v1278 = vpop.f32.mrb[0].mxu0
        %v1279 = vadd.f32 0.0, %v1278
        %1280 = vdwg.mxu0
        %v1282 = vsel %vm1206, %v1193, 0
        %1284 = vmatprep.subr.mxu0 %v1192
        %1285 = vmatpush1.msra.mxu0 %v1191
        %1286 = vmatprep.subr.mxu0 0.0
        %1287 = vmatpush1.msra.mxu0 0.0
        %1288 = vmatprep.subr.mxu0 0.0
        %1289 = vmatpush1.msra.mxu0 0.0
        %1290 = vmatprep.subr.mxu0 0.0
        %1291 = vmatpush1.msra.mxu0 0.0
        %1292 = vmatprep.subr.mxu0 0.0
        %1293 = vmatpush1.msra.mxu0 0.0
        %1294 = vmatprep.subr.mxu0 0.0
        %1295 = vmatpush1.msra.mxu0 0.0
        %1296 = vmatprep.subr.mxu0 0.0
        %1297 = vmatpush1.msra.mxu0 0.0
        %1298 = vmatprep.subr.mxu0 0.0
        %1299 = vmatpush1.msra.mxu0 0.0
        %1300 = vmatprep.subr.mxu0 0.0
        %1301 = vmatpush1.msra.mxu0 0.0
        %1302 = vmatprep.subr.mxu0 0.0
        %1303 = vmatpush1.msra.mxu0 0.0
        %1304 = vmatprep.subr.mxu0 0.0
        %1305 = vmatpush1.msra.mxu0 0.0
        %1306 = vmatprep.subr.mxu0 0.0
        %1307 = vmatpush1.msra.mxu0 0.0
        %1308 = vmatprep.subr.mxu0 0.0
        %1309 = vmatpush1.msra.mxu0 0.0
        %1310 = vmatprep.subr.mxu0 0.0
        %1311 = vmatpush1.msra.mxu0 0.0
        %1312 = vmatprep.subr.mxu0 0.0
        %1313 = vmatpush1.msra.mxu0 0.0
        %1314 = vmatprep.subr.mxu0 0.0
        %1315 = vmatpush1.msra.mxu0 0.0
        %1316 = vmatprep.subr.mxu0 0.0
        %1317 = vmatpush1.msra.mxu0 0.0
        %1318 = vmatprep.subr.mxu0 0.0
        %1319 = vmatpush1.msra.mxu0 0.0
        %1320 = vmatprep.subr.mxu0 0.0
        %1321 = vmatpush1.msra.mxu0 0.0
        %1322 = vmatprep.subr.mxu0 0.0
        %1323 = vmatpush1.msra.mxu0 0.0
        %1324 = vmatprep.subr.mxu0 0.0
        %1325 = vmatpush1.msra.mxu0 0.0
        %1326 = vmatprep.subr.mxu0 0.0
        %1327 = vmatpush1.msra.mxu0 0.0
        %1328 = vmatprep.subr.mxu0 0.0
        %1329 = vmatpush1.msra.mxu0 0.0
        %1330 = vmatprep.subr.mxu0 0.0
        %1331 = vmatpush1.msra.mxu0 0.0
        %1332 = vmatprep.subr.mxu0 0.0
        %1333 = vmatpush1.msra.mxu0 0.0
        %1334 = vmatprep.subr.mxu0 0.0
        %1335 = vmatpush1.msra.mxu0 0.0
        %1336 = vmatprep.subr.mxu0 0.0
        %1337 = vmatpush1.msra.mxu0 0.0
        %1338 = vmatprep.subr.mxu0 0.0
        %1339 = vmatpush1.msra.mxu0 0.0
        %1340 = vmatprep.subr.mxu0 0.0
        %1341 = vmatpush1.msra.mxu0 0.0
        %1342 = vmatprep.subr.mxu0 0.0
        %1343 = vmatpush1.msra.mxu0 0.0
        %1344 = vmatprep.subr.mxu0 0.0
        %1345 = vmatpush1.msra.mxu0 0.0
        %1346 = vmatprep.subr.mxu0 0.0
        %1347 = vmatpush1.msra.mxu0 0.0
        %1348 = vmatprep.mubr.f32.mxu0 0.0
        %1349 = vmatmul.mubr.f32.gmra.mrb[0].mxu0 %v1282
        %v1350 = vpop.f32.mrb[0].mxu0
        %v1351 = vadd.f32 %v1277, %v1350
        %v1352 = vpop.f32.mrb[0].mxu0
        %v1353 = vadd.f32 %v1279, %v1352
        %1354 = vdwg.mxu0
        %1355 = vrot.lane.b32.xlu0 %v1175, 15
        %v1356 = vpop.permute.xlu0 %1355
        %1357 = vrot.lane.b32.xlu0 %v1176, 15
        %v1358 = vpop.permute.xlu0 %1357
        %1359 = vrot.lane.b32.xlu0 %v1177, 15
        %v1360 = vpop.permute.xlu0 %1359
        %v1361 = vsel %vm479, %v1356, %v1358
        %v1362 = vsel %vm479, %v1358, %v1360
        %v1365 = vsel %vm468, %v1361, 0.0
        %v1366 = vsel %vm469, %v1362, 0.0
        %s1367 = scalar_lea.vmem %s3, 16
        %v1368 = vld [vmem:[%s1367] sm:$0xff]
        %v1370 = vsel %vm1206, %v1368, 0
        %1372 = vmatprep.subr.mxu0 %v1366
        %1373 = vmatpush1.msra.mxu0 %v1365
        %1374 = vmatprep.subr.mxu0 0.0
        %1375 = vmatpush1.msra.mxu0 0.0
        %1376 = vmatprep.subr.mxu0 0.0
        %1377 = vmatpush1.msra.mxu0 0.0
        %1378 = vmatprep.subr.mxu0 0.0
        %1379 = vmatpush1.msra.mxu0 0.0
        %1380 = vmatprep.subr.mxu0 0.0
        %1381 = vmatpush1.msra.mxu0 0.0
        %1382 = vmatprep.subr.mxu0 0.0
        %1383 = vmatpush1.msra.mxu0 0.0
        %1384 = vmatprep.subr.mxu0 0.0
        %1385 = vmatpush1.msra.mxu0 0.0
        %1386 = vmatprep.subr.mxu0 0.0
        %1387 = vmatpush1.msra.mxu0 0.0
        %1388 = vmatprep.subr.mxu0 0.0
        %1389 = vmatpush1.msra.mxu0 0.0
        %1390 = vmatprep.subr.mxu0 0.0
        %1391 = vmatpush1.msra.mxu0 0.0
        %1392 = vmatprep.subr.mxu0 0.0
        %1393 = vmatpush1.msra.mxu0 0.0
        %1394 = vmatprep.subr.mxu0 0.0
        %1395 = vmatpush1.msra.mxu0 0.0
        %1396 = vmatprep.subr.mxu0 0.0
        %1397 = vmatpush1.msra.mxu0 0.0
        %1398 = vmatprep.subr.mxu0 0.0
        %1399 = vmatpush1.msra.mxu0 0.0
        %1400 = vmatprep.subr.mxu0 0.0
        %1401 = vmatpush1.msra.mxu0 0.0
        %1402 = vmatprep.subr.mxu0 0.0
        %1403 = vmatpush1.msra.mxu0 0.0
        %1404 = vmatprep.subr.mxu0 0.0
        %1405 = vmatpush1.msra.mxu0 0.0
        %1406 = vmatprep.subr.mxu0 0.0
        %1407 = vmatpush1.msra.mxu0 0.0
        %1408 = vmatprep.subr.mxu0 0.0
        %1409 = vmatpush1.msra.mxu0 0.0
        %1410 = vmatprep.subr.mxu0 0.0
        %1411 = vmatpush1.msra.mxu0 0.0
        %1412 = vmatprep.subr.mxu0 0.0
        %1413 = vmatpush1.msra.mxu0 0.0
        %1414 = vmatprep.subr.mxu0 0.0
        %1415 = vmatpush1.msra.mxu0 0.0
        %1416 = vmatprep.subr.mxu0 0.0
        %1417 = vmatpush1.msra.mxu0 0.0
        %1418 = vmatprep.subr.mxu0 0.0
        %1419 = vmatpush1.msra.mxu0 0.0
        %1420 = vmatprep.subr.mxu0 0.0
        %1421 = vmatpush1.msra.mxu0 0.0
        %1422 = vmatprep.subr.mxu0 0.0
        %1423 = vmatpush1.msra.mxu0 0.0
        %1424 = vmatprep.subr.mxu0 0.0
        %1425 = vmatpush1.msra.mxu0 0.0
        %1426 = vmatprep.subr.mxu0 0.0
        %1427 = vmatpush1.msra.mxu0 0.0
        %1428 = vmatprep.subr.mxu0 0.0
        %1429 = vmatpush1.msra.mxu0 0.0
        %1430 = vmatprep.subr.mxu0 0.0
        %1431 = vmatpush1.msra.mxu0 0.0
        %1432 = vmatprep.subr.mxu0 0.0
        %1433 = vmatpush1.msra.mxu0 0.0
        %1434 = vmatprep.subr.mxu0 0.0
        %1435 = vmatpush1.msra.mxu0 0.0
        %1436 = vmatprep.mubr.f32.mxu0 0.0
        %1437 = vmatmul.mubr.f32.gmra.mrb[0].mxu0 %v1370
        %v1438 = vpop.f32.mrb[0].mxu0
        %v1439 = vadd.f32 0.0, %v1438
        %v1440 = vpop.f32.mrb[0].mxu0
        %v1441 = vadd.f32 0.0, %v1440
        %1442 = vdwg.mxu0
        %v1443 = vadd.f32 %v1351, %v1439
        %v1444 = vadd.f32 %v1353, %v1441
        %1445 = vrot.lane.b32.xlu0 %v1175, 1
        %v1446 = vpop.permute.xlu0 %1445
        %1447 = vrot.lane.b32.xlu0 %v1176, 1
        %v1448 = vpop.permute.xlu0 %1447
        %1449 = vrot.lane.b32.xlu0 %v1177, 1
        %v1450 = vpop.permute.xlu0 %1449
        %v1451 = vsel %vm581, %v1446, %v1448
        %v1452 = vsel %vm581, %v1448, %v1450
        %v1455 = vsel %vm274, %v1451, 0.0
        %v1456 = vsel %vm275, %v1452, 0.0
        %s1457 = scalar_lea.vmem %s3, 24
        %v1458 = vld [vmem:[%s1457] sm:$0xff]
        %v1460 = vsel %vm1206, %v1458, 0
        %1462 = vmatprep.subr.mxu0 %v1456
        %1463 = vmatpush1.msra.mxu0 %v1455
        %1464 = vmatprep.subr.mxu0 0.0
        %1465 = vmatpush1.msra.mxu0 0.0
        %1466 = vmatprep.subr.mxu0 0.0
        %1467 = vmatpush1.msra.mxu0 0.0
        %1468 = vmatprep.subr.mxu0 0.0
        %1469 = vmatpush1.msra.mxu0 0.0
        %1470 = vmatprep.subr.mxu0 0.0
        %1471 = vmatpush1.msra.mxu0 0.0
        %1472 = vmatprep.subr.mxu0 0.0
        %1473 = vmatpush1.msra.mxu0 0.0
        %1474 = vmatprep.subr.mxu0 0.0
        %1475 = vmatpush1.msra.mxu0 0.0
        %1476 = vmatprep.subr.mxu0 0.0
        %1477 = vmatpush1.msra.mxu0 0.0
        %1478 = vmatprep.subr.mxu0 0.0
        %1479 = vmatpush1.msra.mxu0 0.0
        %1480 = vmatprep.subr.mxu0 0.0
        %1481 = vmatpush1.msra.mxu0 0.0
        %1482 = vmatprep.subr.mxu0 0.0
        %1483 = vmatpush1.msra.mxu0 0.0
        %1484 = vmatprep.subr.mxu0 0.0
        %1485 = vmatpush1.msra.mxu0 0.0
        %1486 = vmatprep.subr.mxu0 0.0
        %1487 = vmatpush1.msra.mxu0 0.0
        %1488 = vmatprep.subr.mxu0 0.0
        %1489 = vmatpush1.msra.mxu0 0.0
        %1490 = vmatprep.subr.mxu0 0.0
        %1491 = vmatpush1.msra.mxu0 0.0
        %1492 = vmatprep.subr.mxu0 0.0
        %1493 = vmatpush1.msra.mxu0 0.0
        %1494 = vmatprep.subr.mxu0 0.0
        %1495 = vmatpush1.msra.mxu0 0.0
        %1496 = vmatprep.subr.mxu0 0.0
        %1497 = vmatpush1.msra.mxu0 0.0
        %1498 = vmatprep.subr.mxu0 0.0
        %1499 = vmatpush1.msra.mxu0 0.0
        %1500 = vmatprep.subr.mxu0 0.0
        %1501 = vmatpush1.msra.mxu0 0.0
        %1502 = vmatprep.subr.mxu0 0.0
        %1503 = vmatpush1.msra.mxu0 0.0
        %1504 = vmatprep.subr.mxu0 0.0
        %1505 = vmatpush1.msra.mxu0 0.0
        %1506 = vmatprep.subr.mxu0 0.0
        %1507 = vmatpush1.msra.mxu0 0.0
        %1508 = vmatprep.subr.mxu0 0.0
        %1509 = vmatpush1.msra.mxu0 0.0
        %1510 = vmatprep.subr.mxu0 0.0
        %1511 = vmatpush1.msra.mxu0 0.0
        %1512 = vmatprep.subr.mxu0 0.0
        %1513 = vmatpush1.msra.mxu0 0.0
        %1514 = vmatprep.subr.mxu0 0.0
        %1515 = vmatpush1.msra.mxu0 0.0
        %1516 = vmatprep.subr.mxu0 0.0
        %1517 = vmatpush1.msra.mxu0 0.0
        %1518 = vmatprep.subr.mxu0 0.0
        %1519 = vmatpush1.msra.mxu0 0.0
        %1520 = vmatprep.subr.mxu0 0.0
        %1521 = vmatpush1.msra.mxu0 0.0
        %1522 = vmatprep.subr.mxu0 0.0
        %1523 = vmatpush1.msra.mxu0 0.0
        %1524 = vmatprep.subr.mxu0 0.0
        %1525 = vmatpush1.msra.mxu0 0.0
        %1526 = vmatprep.mubr.f32.mxu0 0.0
        %1527 = vmatmul.mubr.f32.gmra.mrb[0].mxu0 %v1460
        %v1528 = vpop.f32.mrb[0].mxu0
        %v1529 = vadd.f32 0.0, %v1528
        %v1530 = vpop.f32.mrb[0].mxu0
        %v1531 = vadd.f32 0.0, %v1530
        %1532 = vdwg.mxu0
        %v1533 = vadd.f32 %v1443, %v1529
        %v1534 = vadd.f32 %v1444, %v1531
        %s1535 = scalar_lea.vmem %s3, 32
        %v1536 = vld [vmem:[%s1535] sm:$0xff]
        %v1538 = vsel %vm1206, %v1536, 0
        %1540 = vmatprep.subr.mxu0 %v1177
        %1541 = vmatpush1.msra.mxu0 %v1176
        %1542 = vmatprep.subr.mxu0 0.0
        %1543 = vmatpush1.msra.mxu0 0.0
        %1544 = vmatprep.subr.mxu0 0.0
        %1545 = vmatpush1.msra.mxu0 0.0
        %1546 = vmatprep.subr.mxu0 0.0
        %1547 = vmatpush1.msra.mxu0 0.0
        %1548 = vmatprep.subr.mxu0 0.0
        %1549 = vmatpush1.msra.mxu0 0.0
        %1550 = vmatprep.subr.mxu0 0.0
        %1551 = vmatpush1.msra.mxu0 0.0
        %1552 = vmatprep.subr.mxu0 0.0
        %1553 = vmatpush1.msra.mxu0 0.0
        %1554 = vmatprep.subr.mxu0 0.0
        %1555 = vmatpush1.msra.mxu0 0.0
        %1556 = vmatprep.subr.mxu0 0.0
        %1557 = vmatpush1.msra.mxu0 0.0
        %1558 = vmatprep.subr.mxu0 0.0
        %1559 = vmatpush1.msra.mxu0 0.0
        %1560 = vmatprep.subr.mxu0 0.0
        %1561 = vmatpush1.msra.mxu0 0.0
        %1562 = vmatprep.subr.mxu0 0.0
        %1563 = vmatpush1.msra.mxu0 0.0
        %1564 = vmatprep.subr.mxu0 0.0
        %1565 = vmatpush1.msra.mxu0 0.0
        %1566 = vmatprep.subr.mxu0 0.0
        %1567 = vmatpush1.msra.mxu0 0.0
        %1568 = vmatprep.subr.mxu0 0.0
        %1569 = vmatpush1.msra.mxu0 0.0
        %1570 = vmatprep.subr.mxu0 0.0
        %1571 = vmatpush1.msra.mxu0 0.0
        %1572 = vmatprep.subr.mxu0 0.0
        %1573 = vmatpush1.msra.mxu0 0.0
        %1574 = vmatprep.subr.mxu0 0.0
        %1575 = vmatpush1.msra.mxu0 0.0
        %1576 = vmatprep.subr.mxu0 0.0
        %1577 = vmatpush1.msra.mxu0 0.0
        %1578 = vmatprep.subr.mxu0 0.0
        %1579 = vmatpush1.msra.mxu0 0.0
        %1580 = vmatprep.subr.mxu0 0.0
        %1581 = vmatpush1.msra.mxu0 0.0
        %1582 = vmatprep.subr.mxu0 0.0
        %1583 = vmatpush1.msra.mxu0 0.0
        %1584 = vmatprep.subr.mxu0 0.0
        %1585 = vmatpush1.msra.mxu0 0.0
        %1586 = vmatprep.subr.mxu0 0.0
        %1587 = vmatpush1.msra.mxu0 0.0
        %1588 = vmatprep.subr.mxu0 0.0
        %1589 = vmatpush1.msra.mxu0 0.0
        %1590 = vmatprep.subr.mxu0 0.0
        %1591 = vmatpush1.msra.mxu0 0.0
        %1592 = vmatprep.subr.mxu0 0.0
        %1593 = vmatpush1.msra.mxu0 0.0
        %1594 = vmatprep.subr.mxu0 0.0
        %1595 = vmatpush1.msra.mxu0 0.0
        %1596 = vmatprep.subr.mxu0 0.0
        %1597 = vmatpush1.msra.mxu0 0.0
        %1598 = vmatprep.subr.mxu0 0.0
        %1599 = vmatpush1.msra.mxu0 0.0
        %1600 = vmatprep.subr.mxu0 0.0
        %1601 = vmatpush1.msra.mxu0 0.0
        %1602 = vmatprep.subr.mxu0 0.0
        %1603 = vmatpush1.msra.mxu0 0.0
        %1604 = vmatprep.mubr.f32.mxu0 0.0
        %1605 = vmatmul.mubr.f32.gmra.mrb[0].mxu0 %v1538
        %v1606 = vpop.f32.mrb[0].mxu0
        %v1607 = vadd.f32 0.0, %v1606
        %v1608 = vpop.f32.mrb[0].mxu0
        %v1609 = vadd.f32 0.0, %v1608
        %1610 = vdwg.mxu0
        %v1611 = vadd.f32 %v1533, %v1607
        %v1612 = vadd.f32 %v1534, %v1609
        %v1613 = vld [vmem:[#allocation3 + $0x8] sm:$0xff]
        %v1614 = vld [vmem:[#allocation3 + $0x10] sm:$0xff]
        %v1615 = vld [vmem:[#allocation3 + $0x18] sm:$0xff]
        %1619 = vrot.lane.b32.xlu0 %v1613, 127
        %v1620 = vpop.permute.xlu0 %1619
        %1621 = vrot.lane.b32.xlu0 %v1614, 127
        %v1622 = vpop.permute.xlu0 %1621
        %1623 = vrot.lane.b32.xlu0 %v1615, 127
        %v1624 = vpop.permute.xlu0 %1623
        %v1625 = vsel %vm768, %v1620, %v1622
        %v1626 = vsel %vm768, %v1622, %v1624
        %v1629 = vsel %vm468, %v1625, 0.0
        %v1630 = vsel %vm469, %v1626, 0.0
        %s1631 = scalar_lea.vmem %s3, 40
        %v1632 = vld [vmem:[%s1631] sm:$0xff]
        %v1634 = vsel %vm1206, %v1632, 0
        %1636 = vmatprep.subr.mxu0 %v1630
        %1637 = vmatpush1.msra.mxu0 %v1629
        %1638 = vmatprep.subr.mxu0 0.0
        %1639 = vmatpush1.msra.mxu0 0.0
        %1640 = vmatprep.subr.mxu0 0.0
        %1641 = vmatpush1.msra.mxu0 0.0
        %1642 = vmatprep.subr.mxu0 0.0
        %1643 = vmatpush1.msra.mxu0 0.0
        %1644 = vmatprep.subr.mxu0 0.0
        %1645 = vmatpush1.msra.mxu0 0.0
        %1646 = vmatprep.subr.mxu0 0.0
        %1647 = vmatpush1.msra.mxu0 0.0
        %1648 = vmatprep.subr.mxu0 0.0
        %1649 = vmatpush1.msra.mxu0 0.0
        %1650 = vmatprep.subr.mxu0 0.0
        %1651 = vmatpush1.msra.mxu0 0.0
        %1652 = vmatprep.subr.mxu0 0.0
        %1653 = vmatpush1.msra.mxu0 0.0
        %1654 = vmatprep.subr.mxu0 0.0
        %1655 = vmatpush1.msra.mxu0 0.0
        %1656 = vmatprep.subr.mxu0 0.0
        %1657 = vmatpush1.msra.mxu0 0.0
        %1658 = vmatprep.subr.mxu0 0.0
        %1659 = vmatpush1.msra.mxu0 0.0
        %1660 = vmatprep.subr.mxu0 0.0
        %1661 = vmatpush1.msra.mxu0 0.0
        %1662 = vmatprep.subr.mxu0 0.0
        %1663 = vmatpush1.msra.mxu0 0.0
        %1664 = vmatprep.subr.mxu0 0.0
        %1665 = vmatpush1.msra.mxu0 0.0
        %1666 = vmatprep.subr.mxu0 0.0
        %1667 = vmatpush1.msra.mxu0 0.0
        %1668 = vmatprep.subr.mxu0 0.0
        %1669 = vmatpush1.msra.mxu0 0.0
        %1670 = vmatprep.subr.mxu0 0.0
        %1671 = vmatpush1.msra.mxu0 0.0
        %1672 = vmatprep.subr.mxu0 0.0
        %1673 = vmatpush1.msra.mxu0 0.0
        %1674 = vmatprep.subr.mxu0 0.0
        %1675 = vmatpush1.msra.mxu0 0.0
        %1676 = vmatprep.subr.mxu0 0.0
        %1677 = vmatpush1.msra.mxu0 0.0
        %1678 = vmatprep.subr.mxu0 0.0
        %1679 = vmatpush1.msra.mxu0 0.0
        %1680 = vmatprep.subr.mxu0 0.0
        %1681 = vmatpush1.msra.mxu0 0.0
        %1682 = vmatprep.subr.mxu0 0.0
        %1683 = vmatpush1.msra.mxu0 0.0
        %1684 = vmatprep.subr.mxu0 0.0
        %1685 = vmatpush1.msra.mxu0 0.0
        %1686 = vmatprep.subr.mxu0 0.0
        %1687 = vmatpush1.msra.mxu0 0.0
        %1688 = vmatprep.subr.mxu0 0.0
        %1689 = vmatpush1.msra.mxu0 0.0
        %1690 = vmatprep.subr.mxu0 0.0
        %1691 = vmatpush1.msra.mxu0 0.0
        %1692 = vmatprep.subr.mxu0 0.0
        %1693 = vmatpush1.msra.mxu0 0.0
        %1694 = vmatprep.subr.mxu0 0.0
        %1695 = vmatpush1.msra.mxu0 0.0
        %1696 = vmatprep.subr.mxu0 0.0
        %1697 = vmatpush1.msra.mxu0 0.0
        %1698 = vmatprep.subr.mxu0 0.0
        %1699 = vmatpush1.msra.mxu0 0.0
        %1700 = vmatprep.mubr.f32.mxu0 0.0
        %1701 = vmatmul.mubr.f32.gmra.mrb[0].mxu0 %v1634
        %v1702 = vpop.f32.mrb[0].mxu0
        %v1703 = vadd.f32 0.0, %v1702
        %v1704 = vpop.f32.mrb[0].mxu0
        %v1705 = vadd.f32 0.0, %v1704
        %1706 = vdwg.mxu0
        %v1707 = vadd.f32 %v1611, %v1703
        %v1708 = vadd.f32 %v1612, %v1705
        %1709 = vrot.lane.b32.xlu0 %v1613, 113
        %v1710 = vpop.permute.xlu0 %1709
        %1711 = vrot.lane.b32.xlu0 %v1614, 113
        %v1712 = vpop.permute.xlu0 %1711
        %1713 = vrot.lane.b32.xlu0 %v1615, 113
        %v1714 = vpop.permute.xlu0 %1713
        %v1715 = vsel %vm870, %v1710, %v1712
        %v1716 = vsel %vm870, %v1712, %v1714
        %v1719 = vsel %vm274, %v1715, 0.0
        %v1720 = vsel %vm275, %v1716, 0.0
        %s1721 = scalar_lea.vmem %s3, 48
        %v1722 = vld [vmem:[%s1721] sm:$0xff]
        %v1724 = vsel %vm1206, %v1722, 0
        %1726 = vmatprep.subr.mxu0 %v1720
        %1727 = vmatpush1.msra.mxu0 %v1719
        %1728 = vmatprep.subr.mxu0 0.0
        %1729 = vmatpush1.msra.mxu0 0.0
        %1730 = vmatprep.subr.mxu0 0.0
        %1731 = vmatpush1.msra.mxu0 0.0
        %1732 = vmatprep.subr.mxu0 0.0
        %1733 = vmatpush1.msra.mxu0 0.0
        %1734 = vmatprep.subr.mxu0 0.0
        %1735 = vmatpush1.msra.mxu0 0.0
        %1736 = vmatprep.subr.mxu0 0.0
        %1737 = vmatpush1.msra.mxu0 0.0
        %1738 = vmatprep.subr.mxu0 0.0
        %1739 = vmatpush1.msra.mxu0 0.0
        %1740 = vmatprep.subr.mxu0 0.0
        %1741 = vmatpush1.msra.mxu0 0.0
        %1742 = vmatprep.subr.mxu0 0.0
        %1743 = vmatpush1.msra.mxu0 0.0
        %1744 = vmatprep.subr.mxu0 0.0
        %1745 = vmatpush1.msra.mxu0 0.0
        %1746 = vmatprep.subr.mxu0 0.0
        %1747 = vmatpush1.msra.mxu0 0.0
        %1748 = vmatprep.subr.mxu0 0.0
        %1749 = vmatpush1.msra.mxu0 0.0
        %1750 = vmatprep.subr.mxu0 0.0
        %1751 = vmatpush1.msra.mxu0 0.0
        %1752 = vmatprep.subr.mxu0 0.0
        %1753 = vmatpush1.msra.mxu0 0.0
        %1754 = vmatprep.subr.mxu0 0.0
        %1755 = vmatpush1.msra.mxu0 0.0
        %1756 = vmatprep.subr.mxu0 0.0
        %1757 = vmatpush1.msra.mxu0 0.0
        %1758 = vmatprep.subr.mxu0 0.0
        %1759 = vmatpush1.msra.mxu0 0.0
        %1760 = vmatprep.subr.mxu0 0.0
        %1761 = vmatpush1.msra.mxu0 0.0
        %1762 = vmatprep.subr.mxu0 0.0
        %1763 = vmatpush1.msra.mxu0 0.0
        %1764 = vmatprep.subr.mxu0 0.0
        %1765 = vmatpush1.msra.mxu0 0.0
        %1766 = vmatprep.subr.mxu0 0.0
        %1767 = vmatpush1.msra.mxu0 0.0
        %1768 = vmatprep.subr.mxu0 0.0
        %1769 = vmatpush1.msra.mxu0 0.0
        %1770 = vmatprep.subr.mxu0 0.0
        %1771 = vmatpush1.msra.mxu0 0.0
        %1772 = vmatprep.subr.mxu0 0.0
        %1773 = vmatpush1.msra.mxu0 0.0
        %1774 = vmatprep.subr.mxu0 0.0
        %1775 = vmatpush1.msra.mxu0 0.0
        %1776 = vmatprep.subr.mxu0 0.0
        %1777 = vmatpush1.msra.mxu0 0.0
        %1778 = vmatprep.subr.mxu0 0.0
        %1779 = vmatpush1.msra.mxu0 0.0
        %1780 = vmatprep.subr.mxu0 0.0
        %1781 = vmatpush1.msra.mxu0 0.0
        %1782 = vmatprep.subr.mxu0 0.0
        %1783 = vmatpush1.msra.mxu0 0.0
        %1784 = vmatprep.subr.mxu0 0.0
        %1785 = vmatpush1.msra.mxu0 0.0
        %1786 = vmatprep.subr.mxu0 0.0
        %1787 = vmatpush1.msra.mxu0 0.0
        %1788 = vmatprep.subr.mxu0 0.0
        %1789 = vmatpush1.msra.mxu0 0.0
        %1790 = vmatprep.mubr.f32.mxu0 0.0
        %1791 = vmatmul.mubr.f32.gmra.mrb[0].mxu0 %v1724
        %v1792 = vpop.f32.mrb[0].mxu0
        %v1793 = vadd.f32 0.0, %v1792
        %v1794 = vpop.f32.mrb[0].mxu0
        %v1795 = vadd.f32 0.0, %v1794
        %1796 = vdwg.mxu0
        %v1797 = vadd.f32 %v1707, %v1793
        %v1798 = vadd.f32 %v1708, %v1795
        %s1799 = scalar_lea.vmem %s3, 56
        %v1800 = vld [vmem:[%s1799] sm:$0xff]
        %1801 = vrot.lane.b32.xlu0 %v1613, 112
        %v1802 = vpop.permute.xlu0 %1801
        %1803 = vrot.lane.b32.xlu0 %v1614, 112
        %v1804 = vpop.permute.xlu0 %1803
        %1805 = vrot.lane.b32.xlu0 %v1615, 112
        %v1806 = vpop.permute.xlu0 %1805
        %v1807 = vsel %vm974, %v1802, %v1804
        %v1808 = vsel %vm974, %v1804, %v1806
        %v1812 = vsel %vm1206, %v1800, 0
        %1814 = vmatprep.subr.mxu0 %v1808
        %1815 = vmatpush1.msra.mxu0 %v1807
        %1816 = vmatprep.subr.mxu0 0.0
        %1817 = vmatpush1.msra.mxu0 0.0
        %1818 = vmatprep.subr.mxu0 0.0
        %1819 = vmatpush1.msra.mxu0 0.0
        %1820 = vmatprep.subr.mxu0 0.0
        %1821 = vmatpush1.msra.mxu0 0.0
        %1822 = vmatprep.subr.mxu0 0.0
        %1823 = vmatpush1.msra.mxu0 0.0
        %1824 = vmatprep.subr.mxu0 0.0
        %1825 = vmatpush1.msra.mxu0 0.0
        %1826 = vmatprep.subr.mxu0 0.0
        %1827 = vmatpush1.msra.mxu0 0.0
        %1828 = vmatprep.subr.mxu0 0.0
        %1829 = vmatpush1.msra.mxu0 0.0
        %1830 = vmatprep.subr.mxu0 0.0
        %1831 = vmatpush1.msra.mxu0 0.0
        %1832 = vmatprep.subr.mxu0 0.0
        %1833 = vmatpush1.msra.mxu0 0.0
        %1834 = vmatprep.subr.mxu0 0.0
        %1835 = vmatpush1.msra.mxu0 0.0
        %1836 = vmatprep.subr.mxu0 0.0
        %1837 = vmatpush1.msra.mxu0 0.0
        %1838 = vmatprep.subr.mxu0 0.0
        %1839 = vmatpush1.msra.mxu0 0.0
        %1840 = vmatprep.subr.mxu0 0.0
        %1841 = vmatpush1.msra.mxu0 0.0
        %1842 = vmatprep.subr.mxu0 0.0
        %1843 = vmatpush1.msra.mxu0 0.0
        %1844 = vmatprep.subr.mxu0 0.0
        %1845 = vmatpush1.msra.mxu0 0.0
        %1846 = vmatprep.subr.mxu0 0.0
        %1847 = vmatpush1.msra.mxu0 0.0
        %1848 = vmatprep.subr.mxu0 0.0
        %1849 = vmatpush1.msra.mxu0 0.0
        %1850 = vmatprep.subr.mxu0 0.0
        %1851 = vmatpush1.msra.mxu0 0.0
        %1852 = vmatprep.subr.mxu0 0.0
        %1853 = vmatpush1.msra.mxu0 0.0
        %1854 = vmatprep.subr.mxu0 0.0
        %1855 = vmatpush1.msra.mxu0 0.0
        %1856 = vmatprep.subr.mxu0 0.0
        %1857 = vmatpush1.msra.mxu0 0.0
        %1858 = vmatprep.subr.mxu0 0.0
        %1859 = vmatpush1.msra.mxu0 0.0
        %1860 = vmatprep.subr.mxu0 0.0
        %1861 = vmatpush1.msra.mxu0 0.0
        %1862 = vmatprep.subr.mxu0 0.0
        %1863 = vmatpush1.msra.mxu0 0.0
        %1864 = vmatprep.subr.mxu0 0.0
        %1865 = vmatpush1.msra.mxu0 0.0
        %1866 = vmatprep.subr.mxu0 0.0
        %1867 = vmatpush1.msra.mxu0 0.0
        %1868 = vmatprep.subr.mxu0 0.0
        %1869 = vmatpush1.msra.mxu0 0.0
        %1870 = vmatprep.subr.mxu0 0.0
        %1871 = vmatpush1.msra.mxu0 0.0
        %1872 = vmatprep.subr.mxu0 0.0
        %1873 = vmatpush1.msra.mxu0 0.0
        %1874 = vmatprep.subr.mxu0 0.0
        %1875 = vmatpush1.msra.mxu0 0.0
        %1876 = vmatprep.subr.mxu0 0.0
        %1877 = vmatpush1.msra.mxu0 0.0
        %1878 = vmatprep.mubr.f32.mxu0 0.0
        %1879 = vmatmul.mubr.f32.gmra.mrb[0].mxu0 %v1812
        %v1880 = vpop.f32.mrb[0].mxu0
        %v1881 = vadd.f32 0.0, %v1880
        %v1882 = vpop.f32.mrb[0].mxu0
        %v1883 = vadd.f32 0.0, %v1882
        %1884 = vdwg.mxu0
        %v1885 = vadd.f32 %v1797, %v1881
        %v1886 = vadd.f32 %v1798, %v1883
        %1887 = vrot.lane.b32.xlu0 %v1613, 111
        %v1888 = vpop.permute.xlu0 %1887
        %1889 = vrot.lane.b32.xlu0 %v1614, 111
        %v1890 = vpop.permute.xlu0 %1889
        %1891 = vrot.lane.b32.xlu0 %v1615, 111
        %v1892 = vpop.permute.xlu0 %1891
        %v1893 = vsel %vm1068, %v1888, %v1890
        %v1894 = vsel %vm1068, %v1890, %v1892
        %v1897 = vsel %vm468, %v1893, 0.0
        %v1898 = vsel %vm469, %v1894, 0.0
        %s1899 = scalar_lea.vmem %s3, 64
        %v1900 = vld [vmem:[%s1899] sm:$0xff]
        %v1902 = vsel %vm1206, %v1900, 0
        %1904 = vmatprep.subr.mxu0 %v1898
        %1905 = vmatpush1.msra.mxu0 %v1897
        %1906 = vmatprep.subr.mxu0 0.0
        %1907 = vmatpush1.msra.mxu0 0.0
        %1908 = vmatprep.subr.mxu0 0.0
        %1909 = vmatpush1.msra.mxu0 0.0
        %1910 = vmatprep.subr.mxu0 0.0
        %1911 = vmatpush1.msra.mxu0 0.0
        %1912 = vmatprep.subr.mxu0 0.0
        %1913 = vmatpush1.msra.mxu0 0.0
        %1914 = vmatprep.subr.mxu0 0.0
        %1915 = vmatpush1.msra.mxu0 0.0
        %1916 = vmatprep.subr.mxu0 0.0
        %1917 = vmatpush1.msra.mxu0 0.0
        %1918 = vmatprep.subr.mxu0 0.0
        %1919 = vmatpush1.msra.mxu0 0.0
        %1920 = vmatprep.subr.mxu0 0.0
        %1921 = vmatpush1.msra.mxu0 0.0
        %1922 = vmatprep.subr.mxu0 0.0
        %1923 = vmatpush1.msra.mxu0 0.0
        %1924 = vmatprep.subr.mxu0 0.0
        %1925 = vmatpush1.msra.mxu0 0.0
        %1926 = vmatprep.subr.mxu0 0.0
        %1927 = vmatpush1.msra.mxu0 0.0
        %1928 = vmatprep.subr.mxu0 0.0
        %1929 = vmatpush1.msra.mxu0 0.0
        %1930 = vmatprep.subr.mxu0 0.0
        %1931 = vmatpush1.msra.mxu0 0.0
        %1932 = vmatprep.subr.mxu0 0.0
        %1933 = vmatpush1.msra.mxu0 0.0
        %1934 = vmatprep.subr.mxu0 0.0
        %1935 = vmatpush1.msra.mxu0 0.0
        %1936 = vmatprep.subr.mxu0 0.0
        %1937 = vmatpush1.msra.mxu0 0.0
        %1938 = vmatprep.subr.mxu0 0.0
        %1939 = vmatpush1.msra.mxu0 0.0
        %1940 = vmatprep.subr.mxu0 0.0
        %1941 = vmatpush1.msra.mxu0 0.0
        %1942 = vmatprep.subr.mxu0 0.0
        %1943 = vmatpush1.msra.mxu0 0.0
        %1944 = vmatprep.subr.mxu0 0.0
        %1945 = vmatpush1.msra.mxu0 0.0
        %1946 = vmatprep.subr.mxu0 0.0
        %1947 = vmatpush1.msra.mxu0 0.0
        %1948 = vmatprep.subr.mxu0 0.0
        %1949 = vmatpush1.msra.mxu0 0.0
        %1950 = vmatprep.subr.mxu0 0.0
        %1951 = vmatpush1.msra.mxu0 0.0
        %1952 = vmatprep.subr.mxu0 0.0
        %1953 = vmatpush1.msra.mxu0 0.0
        %1954 = vmatprep.subr.mxu0 0.0
        %1955 = vmatpush1.msra.mxu0 0.0
        %1956 = vmatprep.subr.mxu0 0.0
        %1957 = vmatpush1.msra.mxu0 0.0
        %1958 = vmatprep.subr.mxu0 0.0
        %1959 = vmatpush1.msra.mxu0 0.0
        %1960 = vmatprep.subr.mxu0 0.0
        %1961 = vmatpush1.msra.mxu0 0.0
        %1962 = vmatprep.subr.mxu0 0.0
        %1963 = vmatpush1.msra.mxu0 0.0
        %1964 = vmatprep.subr.mxu0 0.0
        %1965 = vmatpush1.msra.mxu0 0.0
        %1966 = vmatprep.subr.mxu0 0.0
        %1967 = vmatpush1.msra.mxu0 0.0
        %1968 = vmatprep.mubr.f32.mxu0 0.0
        %1969 = vmatmul.mubr.f32.gmra.mrb[0].mxu0 %v1902
        %v1970 = vpop.f32.mrb[0].mxu0
        %v1971 = vadd.f32 0.0, %v1970
        %v1972 = vpop.f32.mrb[0].mxu0
        %v1973 = vadd.f32 0.0, %v1972
        %1974 = vdwg.mxu0
        %v1975 = vadd.f32 %v1885, %v1971
        %v1976 = vadd.f32 %v1886, %v1973
        %v1977 = vld [vmem:[%s4] sm:$0xff]
        %1979 = vset.pattern.permute.xlu0 0
        %1980 = vperm.xlu0 %1979, %v1977
        %v1981 = vpop.permute.xlu0 %1980
        %v1983 = vadd.f32 %v1975, %v1981
        %v1984 = vadd.f32 %v1976, %v1981
        %v1985 = vmax.f32 %v1983, 0.0
        %v1986 = vmax.f32 %v1984, 0.0
        %1987 = vst [vmem:[%s217] sm:$0xff] %v1985
        %1988 = vst [vmem:[%s217 + $0x8] sm:$0xff] %v1986
        %s1989 = sand.u32 %s137, 1
        %s1990 = scalar_lea.sflag [#allocation5], %s1989
        %s1991 = sand.u32 %s137, 1
        %s1992 = smul.addr %s1991, 16
        %s1993 = scalar_lea.vmem [#allocation4], %s1992
        // Predicated region
        $region41: #{tpu_custom_call.1} parent=39 // pred_check
          %p1994 = pneg %p147
        $region42: #{tpu_custom_call.1} parent=39 // pred_check_branch
          %1996 = sbr.rel (%p1994) target = $region44
        $region43: #{tpu_custom_call.1} parent=39 // pred_region
          %s1998 = ssub.s32 256, 256
          %1999 = vsyncadd %s1990, %s1998
          %s2000 = smul.addr %s19, 2
          %s2001 = smul.addr %s2000, 128
          %s2002 = scalar_lea.hbm %s5, %s2001
          %s2004 = sshll.u32 %s1993, 4
          %s2005 = int_to_ptr.vmem [resolvable:$true] %s2004
          %2007 = dma.vmem_to_hbm [thread:$0]  %s2005, 256, %s2002, %s1990
        $region44: #{tpu_custom_call.1} parent=39 // pred_fallthru
          _
      $region40: #{tpu_custom_call.1} parent=5 // pred_fallthru
        _
      %p2008 = scmp.le.s32.totalorder 2, %s14
      // Predicated region
      $region45: #{tpu_custom_call.1} parent=5 // pred_check
        %p2009 = pneg %p2008
      $region46: #{tpu_custom_call.1} parent=5 // pred_check_branch
        %2011 = sbr.rel (%p2009) target = $region48
      $region47: #{tpu_custom_call.1} parent=5 // pred_region
        %s2012 = ssub.s32 %s14, 2
        // Predicated region
        $region49: #{tpu_custom_call.1} parent=47 // pred_check
          %p2013 = pneg %p153
        $region50: #{tpu_custom_call.1} parent=47 // pred_check_branch
          %2015 = sbr.rel (%p2013) target = $region52
        $region51: #{tpu_custom_call.1} parent=47 // pred_region
          %s2016 = sand.u32 %s138, 1
          %s2017 = scalar_lea.sflag [#allocation5], %s2016
          %s2018 = sand.u32 %s138, 1
          %s2019 = smul.addr %s2018, 16
          %s2020 = scalar_lea.vmem [#allocation4], %s2019
          %2021 = dma.done %s2017, 256
        $region52: #{tpu_custom_call.1} parent=47 // pred_fallthru
          _
      $region48: #{tpu_custom_call.1} parent=5 // pred_fallthru
        _
    $region6: #{tpu_custom_call.1} parent=1 // loop_footer
      %s18 = sadd.s32 1, %s14
    $region7: #{tpu_custom_call.1} parent=1 // loop_footer_branch
      %13 = sbr.rel target = $region3
    $region8: #{tpu_custom_call.1} parent=1 // loop_exit
      _
    %2022 = vsyncpa [#allocation5], 1
    %s2023 = scalar_lea.sflag [#allocation5], 1
    %2024 = vsyncpa %s2023, 1

</llo_original>
